<compile_context>
chip_gen: v6e
topology: v6e:2x2x1
jax: 0.10.0
libtpu: 0.0.40
codegen_flags: <defaults>
</compile_context>

<pallas_src>
import math

import jax
import jax.numpy as jnp
from jax import lax
from jax.experimental import pallas as pl
from jax.experimental.pallas import tpu as pltpu


def _silu(v):
    return v * (1.0 / (1.0 + jnp.exp(-v)))


def _softplus(v):
    # numerically-safe softplus using only exp/log (EUP-friendly)
    return jnp.where(v > 20.0, v, jnp.log(1.0 + jnp.exp(jnp.minimum(v, 20.0))))


def mamba_mixer_kernel(h_ref, w_in_x_ref, w_in_z_ref, cwx_ref, cwz_ref,
                       wxp_dt_ref, wxp_b_ref, wxp_c_ref,
                       w_dt_ref, b_dt_ref, a_log_ref, d_ref,
                       w_out_y_ref, w_out_z_ref,
                       out_ref,
                       delta_scr, dx_scr, b_scr, c_scr, y_scr,
                       da_scr, dbu_scr, st_scr):
    f32 = jnp.float32
    L, _ = h_ref.shape                        # (L, d_model)
    K, d_half = cwx_ref.shape                 # conv taps, depthwise channels
    d_state = a_log_ref.shape[0]
    Tc = da_scr.shape[0]                      # scan chunk length (divides L)
    n_chunks = L // Tc
    pad_l = (K - 1) // 2                      # torch 'same' for even K: 1 left, 2 right
    mm_dt = w_in_x_ref.dtype                  # matmul operand dtype (bf16 in the wrapper)

    # ---- in_proj (no bias); weight pre-split into x / z halves ----
    h_mm = h_ref[...].astype(mm_dt)
    x = jnp.dot(h_mm, w_in_x_ref[...], preferred_element_type=f32)   # (L, d_half) f32
    z = jnp.dot(h_mm, w_in_z_ref[...], preferred_element_type=f32)   # (L, d_half) f32

    # ---- depthwise 'same' conv along time: K sublane rolls + boundary masks (no scratch) ----
    t_idx = lax.broadcasted_iota(jnp.int32, (L, d_half), 0)

    def dwconv(v, w_ref):
        acc = jnp.zeros((L, d_half), f32)
        for j in range(K):                    # K == 4, static
            d = j - pad_l                     # tap offset in {-1, 0, 1, 2}
            if d == 0:
                sh = v
            else:
                sh = pltpu.roll(v, shift=(-d) % L, axis=0)   # sh[t] = v[(t + d) % L]
                if d > 0:
                    sh = jnp.where(t_idx < L - d, sh, 0.0)   # zero wrapped tail rows
                else:
                    sh = jnp.where(t_idx >= -d, sh, 0.0)     # zero wrapped head rows
            acc = acc + w_ref[j:j + 1, :].astype(f32) * sh
        return acc

    x = _silu(dwconv(x, cwx_ref))
    z = _silu(dwconv(z, cwz_ref))

    # ---- x_proj (pre-split dt / B / C) and dt_proj (+bias added twice, as in the module) ----
    x_mm = x.astype(mm_dt)
    dt_low = jnp.dot(x_mm, wxp_dt_ref[...], preferred_element_type=f32)      # (L, dt_rank)
    b_scr[...] = jnp.dot(x_mm, wxp_b_ref[...], preferred_element_type=f32)   # (L, d_state)
    c_scr[...] = jnp.dot(x_mm, wxp_c_ref[...], preferred_element_type=f32)   # (L, d_state)

    delta = jnp.dot(dt_low.astype(mm_dt), w_dt_ref[...], preferred_element_type=f32)
    delta = _softplus(delta + 2.0 * b_dt_ref[...].astype(f32))               # (L, d_half) f32
    delta_scr[...] = delta
    dx_scr[...] = delta * x

    a_neg = -jnp.exp(a_log_ref[...].astype(f32))                             # (d_state, d_half)

    # ---- chunked selective scan: hoist dA/dBu out of the recurrence, chunk the readout ----
    def chunk_body(ci, state):
        off = pl.multiple_of(ci * Tc, Tc)
        delta_c = delta_scr[pl.ds(off, Tc), :]             # (Tc, d_half)
        dx_c = dx_scr[pl.ds(off, Tc), :]                   # (Tc, d_half)
        b_c = b_scr[pl.ds(off, Tc), :]                     # (Tc, d_state)
        c_c = c_scr[pl.ds(off, Tc), :]                     # (Tc, d_state)

        # state-independent precompute (vectorized EUP/VPU, off the critical path)
        da_scr[...] = jnp.exp(delta_c[:, None, :] * a_neg[None, :, :])   # (Tc, d_state, d_half)
        dbu_scr[...] = b_c[:, :, None] * dx_c[:, None, :]                # (Tc, d_state, d_half)

        # serial recurrence: 2 VPU FMAs per step, fully unrolled over the chunk
        for j in range(Tc):
            state = da_scr[j] * state + dbu_scr[j]
            st_scr[j] = state

        # chunked C readout + one aligned (Tc, d_half) store
        y_scr[pl.ds(off, Tc), :] = jnp.sum(c_c[:, :, None] * st_scr[...], axis=1)
        return state

    lax.fori_loop(0, n_chunks, chunk_body, jnp.zeros((d_state, d_half), f32))

    # ---- D skip, then out_proj applied to the y / z halves separately (no concat) ----
    y = y_scr[...] + d_ref[...].astype(f32) * x
    out = (jnp.dot(y.astype(mm_dt), w_out_y_ref[...], preferred_element_type=f32)
           + jnp.dot(z.astype(mm_dt), w_out_z_ref[...], preferred_element_type=f32))
    out_ref[...] = out.astype(out_ref.dtype)


def mamba_vision_mixer_forward(hidden_states, params, *, mm_dtype=jnp.bfloat16):
    """hidden_states: (B, L, d_model) -> (B, L, d_model)."""
    B, L, d_model = hidden_states.shape
    w_in = params['w_in']            # (d_inner, d_model)
    cw_x = params['conv_w_x']        # (d_half, d_conv)
    cw_z = params['conv_w_z']        # (d_half, d_conv)
    w_xp = params['w_x_proj']        # (dt_rank + 2*d_state, d_half)
    w_dt = params['w_dt_proj']       # (d_half, dt_rank)
    b_dt = params['b_dt_proj']       # (d_half,)
    a_log = params['A_log']          # (d_half, d_state)
    d_skip = params['D']             # (d_half,)
    w_out = params['w_out']          # (d_model, d_inner)

    d_half = w_in.shape[0] // 2
    d_state = a_log.shape[1]
    dt_rank = w_dt.shape[1]
    f32 = jnp.float32

    # scan chunk length: largest of 8/4/2/1 dividing L (8 = sublane-aligned slabs)
    Tc = next(t for t in (8, 4, 2, 1) if L % t == 0)

    # Glue (trace-time only): split + transpose weights into time-major-friendly
    # orientations.  MXU-side weights cast to mm_dtype (bf16); everything feeding the
    # softplus/exp/scan path stays f32.
    w_in_x_t = jnp.transpose(w_in[:d_half]).astype(mm_dtype)            # (d_model, d_half)
    w_in_z_t = jnp.transpose(w_in[d_half:]).astype(mm_dtype)            # (d_model, d_half)
    cw_x_t = jnp.transpose(cw_x).astype(f32)                            # (K, d_half)
    cw_z_t = jnp.transpose(cw_z).astype(f32)                            # (K, d_half)
    wxp_dt_t = jnp.transpose(w_xp[:dt_rank]).astype(mm_dtype)           # (d_half, dt_rank)
    wxp_b_t = jnp.transpose(w_xp[dt_rank:dt_rank + d_state]).astype(mm_dtype)
    wxp_c_t = jnp.transpose(w_xp[dt_rank + d_state:]).astype(mm_dtype)
    w_dt_t = jnp.transpose(w_dt).astype(mm_dtype)                       # (dt_rank, d_half)
    b_dt_row = b_dt.reshape(1, d_half).astype(f32)
    a_log_t = jnp.transpose(a_log).astype(f32)                          # (d_state, d_half)
    d_row = d_skip.reshape(1, d_half).astype(f32)
    w_out_y_t = jnp.transpose(w_out[:, :d_half]).astype(mm_dtype)       # (d_half, d_model)
    w_out_z_t = jnp.transpose(w_out[:, d_half:]).astype(mm_dtype)       # (d_half, d_model)

    weights = [w_in_x_t, w_in_z_t, cw_x_t, cw_z_t, wxp_dt_t, wxp_b_t, wxp_c_t,
               w_dt_t, b_dt_row, a_log_t, d_row, w_out_y_t, w_out_z_t]

    def full_spec(a):
        # Constant weights: same block every grid step (revisited, not re-DMA'd).
        return pl.BlockSpec(a.shape, lambda b: (0,) * a.ndim)

    scratch_shapes = [
        pltpu.VMEM((L, d_half), f32),             # delta
        pltpu.VMEM((L, d_half), f32),             # delta * x
        pltpu.VMEM((L, d_state), f32),            # B
        pltpu.VMEM((L, d_state), f32),            # C
        pltpu.VMEM((L, d_half), f32),             # y
        pltpu.VMEM((Tc, d_state, d_half), f32),   # dA chunk
        pltpu.VMEM((Tc, d_state, d_half), f32),   # dBu chunk
        pltpu.VMEM((Tc, d_state, d_half), f32),   # per-step states chunk
    ]

    # Explicit scoped-VMEM budget (v7x has only 64 MiB): scratches + double-buffered
    # in/out blocks + weight buffers with generous headroom, clamped to a safe range.
    itemsize = hidden_states.dtype.itemsize
    scratch_bytes = 4 * (3 * L * d_half + 2 * L * d_state + 3 * Tc * d_state * d_half)
    io_bytes = 2 * 2 * L * d_model * itemsize
    weight_bytes = int(sum(2 * w.size * w.dtype.itemsize for w in weights))
    vmem_limit = int(min(max(4 * (scratch_bytes + io_bytes + weight_bytes),
                             16 * 1024 * 1024), 48 * 1024 * 1024))

    out = pl.pallas_call(
        mamba_mixer_kernel,
        grid=(B,),
        in_specs=[pl.BlockSpec((None, L, d_model), lambda b: (b, 0, 0))]
                 + [full_spec(w) for w in weights],
        out_specs=pl.BlockSpec((None, L, d_model), lambda b: (b, 0, 0)),
        out_shape=jax.ShapeDtypeStruct((B, L, d_model), hidden_states.dtype),
        scratch_shapes=scratch_shapes,
        compiler_params=pltpu.CompilerParams(
            dimension_semantics=("parallel",),
            vmem_limit_bytes=vmem_limit),
    )(hidden_states, *weights)
    return out


def reference_forward(hidden_states, params):
    """Pure-JAX f32 reference of the PyTorch forward (for sanity checking)."""
    w_in, cw_x, cw_z = params['w_in'], params['conv_w_x'], params['conv_w_z']
    w_xp, w_dt, b_dt = params['w_x_proj'], params['w_dt_proj'], params['b_dt_proj']
    a_log, d_skip, w_out = params['A_log'], params['D'], params['w_out']
    d_half = w_in.shape[0] // 2
    d_state = a_log.shape[1]
    dt_rank = w_dt.shape[1]
    K = cw_x.shape[1]
    pad_l, pad_r = (K - 1) // 2, (K - 1) - (K - 1) // 2
    B_, L_, _ = hidden_states.shape

    def dwconv(v, w):
        vp = jnp.pad(v, ((0, 0), (pad_l, pad_r)))
        o = jnp.zeros_like(v)
        for j in range(K):
            o = o + w[:, j:j + 1] * vp[:, j:j + L_]
        return o

    silu = lambda u: u * jax.nn.sigmoid(u)
    outs = []
    for b in range(B_):
        hb = hidden_states[b]
        xz = hb @ w_in.T
        x = xz[:, :d_half].T
        z = xz[:, d_half:].T
        x = silu(dwconv(x, cw_x))
        z = silu(dwconv(z, cw_z))
        x_dbl = x.T @ w_xp.T
        dtl = x_dbl[:, :dt_rank]
        Bm = x_dbl[:, dt_rank:dt_rank + d_state]
        Cm = x_dbl[:, dt_rank + d_state:]
        # dt_proj adds its bias; selective_scan adds delta_bias (same bias) again
        delta = jax.nn.softplus(dtl @ w_dt.T + 2.0 * b_dt[None, :])
        A = -jnp.exp(a_log)
        st = jnp.zeros((d_half, d_state), jnp.float32)
        ys = []
        for t in range(L_):
            dA = jnp.exp(delta[t][:, None] * A)
            dBu = (delta[t] * x[:, t])[:, None] * Bm[t][None, :]
            st = dA * st + dBu
            ys.append(st @ Cm[t])
        y = jnp.stack(ys, axis=1) + d_skip[:, None] * x
        yz = jnp.concatenate([y, z], axis=0)
        outs.append(yz.T @ w_out.T)
    return jnp.stack(outs, axis=0)


if __name__ == "__main__":
    d_model, d_state, d_conv, expand = 32, 16, 4, 2
    d_inner = expand * d_model
    d_half = d_inner // 2
    dt_rank = math.ceil(d_model / 16)
    dt_min, dt_max, dt_init_floor = 0.001, 0.1, 1e-4
    batch, seqlen = 2, 8

    key = jax.random.PRNGKey(0)
    ks = jax.random.split(key, 8)

    def unif(k, shape, bound):
        return jax.random.uniform(k, shape, jnp.float32, -bound, bound)

    params = {
        'w_in': unif(ks[0], (d_inner, d_model), 1.0 / math.sqrt(d_model)),
        'w_x_proj': unif(ks[1], (dt_rank + 2 * d_state, d_half), 1.0 / math.sqrt(d_half)),
        'w_dt_proj': unif(ks[2], (d_half, dt_rank), dt_rank ** -0.5),
        'w_out': unif(ks[3], (d_model, d_inner), 1.0 / math.sqrt(d_inner)),
        # depthwise conv weights: PyTorch (d_half, 1, K) squeezed to (d_half, K); no bias
        'conv_w_x': unif(ks[4], (d_half, d_conv), 1.0 / math.sqrt(d_conv)),
        'conv_w_z': unif(ks[5], (d_half, d_conv), 1.0 / math.sqrt(d_conv)),
        'A_log': jnp.log(jnp.tile(jnp.arange(1, d_state + 1, dtype=jnp.float32)[None, :],
                                  (d_half, 1))),
        'D': jnp.ones((d_half,), jnp.float32),
    }
    # dt_proj bias: inverse-softplus of dt ~ LogUniform[dt_min, dt_max], floored
    dt = jnp.exp(jax.random.uniform(ks[6], (d_half,), jnp.float32)
                 * (math.log(dt_max) - math.log(dt_min)) + math.log(dt_min))
    dt = jnp.maximum(dt, dt_init_floor)
    params['b_dt_proj'] = dt + jnp.log(-jnp.expm1(-dt))

    x_in = jax.random.normal(ks[7], (batch, seqlen, d_model), jnp.float32)

    out = jax.jit(lambda h: mamba_vision_mixer_forward(h, params))(x_in)
    out = jax.block_until_ready(out)
    assert out.shape == (batch, seqlen, d_model)

    ref = reference_forward(x_in, params)
    max_err = float(jnp.max(jnp.abs(out - ref)))
    # bf16 MXU operands with f32 accumulation vs. f32 reference -> slightly looser bound
    if not (max_err < 3e-2):
        raise AssertionError(f"kernel/reference mismatch: max abs err = {max_err}")
    print("KERNEL_OK")
</pallas_src>

<mosaic_0001>
module attributes {stable_mosaic.version = 11 : i64} {
  func.func @mamba_mixer_kernel(%arg0: i32, %arg1: memref<1x8x32xf32, #tpu.memory_space<vmem>>, %arg2: memref<32x32xbf16, #tpu.memory_space<vmem>>, %arg3: memref<32x32xbf16, #tpu.memory_space<vmem>>, %arg4: memref<4x32xf32, #tpu.memory_space<vmem>>, %arg5: memref<4x32xf32, #tpu.memory_space<vmem>>, %arg6: memref<32x2xbf16, #tpu.memory_space<vmem>>, %arg7: memref<32x16xbf16, #tpu.memory_space<vmem>>, %arg8: memref<32x16xbf16, #tpu.memory_space<vmem>>, %arg9: memref<2x32xbf16, #tpu.memory_space<vmem>>, %arg10: memref<1x32xf32, #tpu.memory_space<vmem>>, %arg11: memref<16x32xf32, #tpu.memory_space<vmem>>, %arg12: memref<1x32xf32, #tpu.memory_space<vmem>>, %arg13: memref<32x32xbf16, #tpu.memory_space<vmem>>, %arg14: memref<32x32xbf16, #tpu.memory_space<vmem>>, %arg15: memref<1x8x32xf32, #tpu.memory_space<vmem>>, %arg16: memref<8x32xf32, #tpu.memory_space<vmem>>, %arg17: memref<8x32xf32, #tpu.memory_space<vmem>>, %arg18: memref<8x16xf32, #tpu.memory_space<vmem>>, %arg19: memref<8x16xf32, #tpu.memory_space<vmem>>, %arg20: memref<8x32xf32, #tpu.memory_space<vmem>>, %arg21: memref<8x16x32xf32, #tpu.memory_space<vmem>>, %arg22: memref<8x16x32xf32, #tpu.memory_space<vmem>>, %arg23: memref<8x16x32xf32, #tpu.memory_space<vmem>>) attributes {dimension_semantics = [#tpu.dimension_semantics<parallel>], iteration_bounds = array<i64: 2>, scalar_prefetch = 0 : i64, scratch_operands = 8 : i64, tpu.core_type = #tpu.core_type<tc>, window_params = [{transform_indices = @transform_0, window_bounds = array<i64: 1, 8, 32>}, {pipeline_mode = #tpu.pipeline_mode<synchronous>, transform_indices = @transform_1, window_bounds = array<i64: 32, 32>}, {pipeline_mode = #tpu.pipeline_mode<synchronous>, transform_indices = @transform_2, window_bounds = array<i64: 32, 32>}, {pipeline_mode = #tpu.pipeline_mode<synchronous>, transform_indices = @transform_3, window_bounds = array<i64: 4, 32>}, {pipeline_mode = #tpu.pipeline_mode<synchronous>, transform_indices = @transform_4, window_bounds = array<i64: 4, 32>}, {pipeline_mode = #tpu.pipeline_mode<synchronous>, transform_indices = @transform_5, window_bounds = array<i64: 32, 2>}, {pipeline_mode = #tpu.pipeline_mode<synchronous>, transform_indices = @transform_6, window_bounds = array<i64: 32, 16>}, {pipeline_mode = #tpu.pipeline_mode<synchronous>, transform_indices = @transform_7, window_bounds = array<i64: 32, 16>}, {pipeline_mode = #tpu.pipeline_mode<synchronous>, transform_indices = @transform_8, window_bounds = array<i64: 2, 32>}, {pipeline_mode = #tpu.pipeline_mode<synchronous>, transform_indices = @transform_9, window_bounds = array<i64: 1, 32>}, {pipeline_mode = #tpu.pipeline_mode<synchronous>, transform_indices = @transform_10, window_bounds = array<i64: 16, 32>}, {pipeline_mode = #tpu.pipeline_mode<synchronous>, transform_indices = @transform_11, window_bounds = array<i64: 1, 32>}, {pipeline_mode = #tpu.pipeline_mode<synchronous>, transform_indices = @transform_12, window_bounds = array<i64: 32, 32>}, {pipeline_mode = #tpu.pipeline_mode<synchronous>, transform_indices = @transform_13, window_bounds = array<i64: 32, 32>}, {transform_indices = @transform_14, window_bounds = array<i64: 1, 8, 32>}]} {
    %c0 = arith.constant 0 : index
    %c0_0 = arith.constant 0 : index
    %c0_1 = arith.constant 0 : index
    %0 = vector.load %arg1[%c0, %c0_0, %c0_1] : memref<1x8x32xf32, #tpu.memory_space<vmem>>, vector<1x8x32xf32>
    %1 = vector.shape_cast %0 : vector<1x8x32xf32> to vector<8x32xf32>
    %2 = arith.truncf %1 : vector<8x32xf32> to vector<8x32xbf16>
    %c0_2 = arith.constant 0 : index
    %c0_3 = arith.constant 0 : index
    %3 = vector.load %arg2[%c0_2, %c0_3] : memref<32x32xbf16, #tpu.memory_space<vmem>>, vector<32x32xbf16>
    %cst = arith.constant dense<0.000000e+00> : vector<8x32xf32>
    %4 = tpu.matmul %2, %3, %cst {dimension_numbers = #tpu.dot_dimension_numbers<[1], [0], [0], [1], [0, 0, 1, 1], [], []>} : vector<8x32xbf16>, vector<32x32xbf16>, vector<8x32xf32> -> vector<8x32xf32>
    %c0_4 = arith.constant 0 : index
    %c0_5 = arith.constant 0 : index
    %5 = vector.load %arg3[%c0_4, %c0_5] : memref<32x32xbf16, #tpu.memory_space<vmem>>, vector<32x32xbf16>
    %cst_6 = arith.constant dense<0.000000e+00> : vector<8x32xf32>
    %6 = tpu.matmul %2, %5, %cst_6 {dimension_numbers = #tpu.dot_dimension_numbers<[1], [0], [0], [1], [0, 0, 1, 1], [], []>} : vector<8x32xbf16>, vector<32x32xbf16>, vector<8x32xf32> -> vector<8x32xf32>
    %7 = tpu.iota {dimensions = array<i32: 0>} : vector<8x32xi32>
    %cst_7 = arith.constant 0.000000e+00 : f32
    %8 = vector.broadcast %cst_7 : f32 to vector<8x32xf32>
    %c1_i32 = arith.constant 1 : i32
    %9 = tpu.dynamic_rotate %4 by %c1_i32 dim 0 : vector<8x32xf32>, i32 -> vector<8x32xf32>
    %c1_i32_8 = arith.constant 1 : i32
    %10 = vector.broadcast %c1_i32_8 : i32 to vector<8x32xi32>
    %11 = arith.cmpi sge, %7, %10 : vector<8x32xi32>
    %cst_9 = arith.constant 0.000000e+00 : f32
    %12 = vector.broadcast %cst_9 : f32 to vector<8x32xf32>
    %13 = arith.select %11, %9, %12 : vector<8x32xi1>, vector<8x32xf32>
    %c0_10 = arith.constant 0 : index
    %c0_11 = arith.constant 0 : index
    %14 = vector.load %arg4[%c0_10, %c0_11] : memref<4x32xf32, #tpu.memory_space<vmem>>, vector<1x32xf32>
    %15 = vector.broadcast %14 : vector<1x32xf32> to vector<8x32xf32>
    %16 = arith.mulf %15, %13 : vector<8x32xf32>
    %17 = arith.addf %8, %16 : vector<8x32xf32>
    %c1 = arith.constant 1 : index
    %c0_12 = arith.constant 0 : index
    %18 = vector.load %arg4[%c1, %c0_12] : memref<4x32xf32, #tpu.memory_space<vmem>>, vector<1x32xf32>
    %19 = vector.broadcast %18 : vector<1x32xf32> to vector<8x32xf32>
    %20 = arith.mulf %19, %4 : vector<8x32xf32>
    %21 = arith.addf %17, %20 : vector<8x32xf32>
    %c7_i32 = arith.constant 7 : i32
    %22 = tpu.dynamic_rotate %4 by %c7_i32 dim 0 : vector<8x32xf32>, i32 -> vector<8x32xf32>
    %c7_i32_13 = arith.constant 7 : i32
    %23 = vector.broadcast %c7_i32_13 : i32 to vector<8x32xi32>
    %24 = arith.cmpi slt, %7, %23 : vector<8x32xi32>
    %cst_14 = arith.constant 0.000000e+00 : f32
    %25 = vector.broadcast %cst_14 : f32 to vector<8x32xf32>
    %26 = arith.select %24, %22, %25 : vector<8x32xi1>, vector<8x32xf32>
    %c2 = arith.constant 2 : index
    %c0_15 = arith.constant 0 : index
    %27 = vector.load %arg4[%c2, %c0_15] : memref<4x32xf32, #tpu.memory_space<vmem>>, vector<1x32xf32>
    %28 = vector.broadcast %27 : vector<1x32xf32> to vector<8x32xf32>
    %29 = arith.mulf %28, %26 : vector<8x32xf32>
    %30 = arith.addf %21, %29 : vector<8x32xf32>
    %c6_i32 = arith.constant 6 : i32
    %31 = tpu.dynamic_rotate %4 by %c6_i32 dim 0 : vector<8x32xf32>, i32 -> vector<8x32xf32>
    %c6_i32_16 = arith.constant 6 : i32
    %32 = vector.broadcast %c6_i32_16 : i32 to vector<8x32xi32>
    %33 = arith.cmpi slt, %7, %32 : vector<8x32xi32>
    %cst_17 = arith.constant 0.000000e+00 : f32
    %34 = vector.broadcast %cst_17 : f32 to vector<8x32xf32>
    %35 = arith.select %33, %31, %34 : vector<8x32xi1>, vector<8x32xf32>
    %c3 = arith.constant 3 : index
    %c0_18 = arith.constant 0 : index
    %36 = vector.load %arg4[%c3, %c0_18] : memref<4x32xf32, #tpu.memory_space<vmem>>, vector<1x32xf32>
    %37 = vector.broadcast %36 : vector<1x32xf32> to vector<8x32xf32>
    %38 = arith.mulf %37, %35 : vector<8x32xf32>
    %39 = arith.addf %30, %38 : vector<8x32xf32>
    %cst_19 = arith.constant 0.000000e+00 : f32
    %40 = vector.broadcast %cst_19 : f32 to vector<8x32xf32>
    %41 = arith.subf %40, %39 : vector<8x32xf32>
    %42 = math.exp %41 : vector<8x32xf32>
    %cst_20 = arith.constant 1.000000e+00 : f32
    %43 = vector.broadcast %cst_20 : f32 to vector<8x32xf32>
    %44 = arith.addf %43, %42 : vector<8x32xf32>
    %cst_21 = arith.constant 1.000000e+00 : f32
    %45 = vector.broadcast %cst_21 : f32 to vector<8x32xf32>
    %46 = arith.divf %45, %44 : vector<8x32xf32>
    %47 = arith.mulf %39, %46 : vector<8x32xf32>
    %cst_22 = arith.constant 0.000000e+00 : f32
    %48 = vector.broadcast %cst_22 : f32 to vector<8x32xf32>
    %c1_i32_23 = arith.constant 1 : i32
    %49 = tpu.dynamic_rotate %6 by %c1_i32_23 dim 0 : vector<8x32xf32>, i32 -> vector<8x32xf32>
    %c1_i32_24 = arith.constant 1 : i32
    %50 = vector.broadcast %c1_i32_24 : i32 to vector<8x32xi32>
    %51 = arith.cmpi sge, %7, %50 : vector<8x32xi32>
    %cst_25 = arith.constant 0.000000e+00 : f32
    %52 = vector.broadcast %cst_25 : f32 to vector<8x32xf32>
    %53 = arith.select %51, %49, %52 : vector<8x32xi1>, vector<8x32xf32>
    %c0_26 = arith.constant 0 : index
    %c0_27 = arith.constant 0 : index
    %54 = vector.load %arg5[%c0_26, %c0_27] : memref<4x32xf32, #tpu.memory_space<vmem>>, vector<1x32xf32>
    %55 = vector.broadcast %54 : vector<1x32xf32> to vector<8x32xf32>
    %56 = arith.mulf %55, %53 : vector<8x32xf32>
    %57 = arith.addf %48, %56 : vector<8x32xf32>
    %c1_28 = arith.constant 1 : index
    %c0_29 = arith.constant 0 : index
    %58 = vector.load %arg5[%c1_28, %c0_29] : memref<4x32xf32, #tpu.memory_space<vmem>>, vector<1x32xf32>
    %59 = vector.broadcast %58 : vector<1x32xf32> to vector<8x32xf32>
    %60 = arith.mulf %59, %6 : vector<8x32xf32>
    %61 = arith.addf %57, %60 : vector<8x32xf32>
    %c7_i32_30 = arith.constant 7 : i32
    %62 = tpu.dynamic_rotate %6 by %c7_i32_30 dim 0 : vector<8x32xf32>, i32 -> vector<8x32xf32>
    %c7_i32_31 = arith.constant 7 : i32
    %63 = vector.broadcast %c7_i32_31 : i32 to vector<8x32xi32>
    %64 = arith.cmpi slt, %7, %63 : vector<8x32xi32>
    %cst_32 = arith.constant 0.000000e+00 : f32
    %65 = vector.broadcast %cst_32 : f32 to vector<8x32xf32>
    %66 = arith.select %64, %62, %65 : vector<8x32xi1>, vector<8x32xf32>
    %c2_33 = arith.constant 2 : index
    %c0_34 = arith.constant 0 : index
    %67 = vector.load %arg5[%c2_33, %c0_34] : memref<4x32xf32, #tpu.memory_space<vmem>>, vector<1x32xf32>
    %68 = vector.broadcast %67 : vector<1x32xf32> to vector<8x32xf32>
    %69 = arith.mulf %68, %66 : vector<8x32xf32>
    %70 = arith.addf %61, %69 : vector<8x32xf32>
    %c6_i32_35 = arith.constant 6 : i32
    %71 = tpu.dynamic_rotate %6 by %c6_i32_35 dim 0 : vector<8x32xf32>, i32 -> vector<8x32xf32>
    %c6_i32_36 = arith.constant 6 : i32
    %72 = vector.broadcast %c6_i32_36 : i32 to vector<8x32xi32>
    %73 = arith.cmpi slt, %7, %72 : vector<8x32xi32>
    %cst_37 = arith.constant 0.000000e+00 : f32
    %74 = vector.broadcast %cst_37 : f32 to vector<8x32xf32>
    %75 = arith.select %73, %71, %74 : vector<8x32xi1>, vector<8x32xf32>
    %c3_38 = arith.constant 3 : index
    %c0_39 = arith.constant 0 : index
    %76 = vector.load %arg5[%c3_38, %c0_39] : memref<4x32xf32, #tpu.memory_space<vmem>>, vector<1x32xf32>
    %77 = vector.broadcast %76 : vector<1x32xf32> to vector<8x32xf32>
    %78 = arith.mulf %77, %75 : vector<8x32xf32>
    %79 = arith.addf %70, %78 : vector<8x32xf32>
    %cst_40 = arith.constant 0.000000e+00 : f32
    %80 = vector.broadcast %cst_40 : f32 to vector<8x32xf32>
    %81 = arith.subf %80, %79 : vector<8x32xf32>
    %82 = math.exp %81 : vector<8x32xf32>
    %cst_41 = arith.constant 1.000000e+00 : f32
    %83 = vector.broadcast %cst_41 : f32 to vector<8x32xf32>
    %84 = arith.addf %83, %82 : vector<8x32xf32>
    %cst_42 = arith.constant 1.000000e+00 : f32
    %85 = vector.broadcast %cst_42 : f32 to vector<8x32xf32>
    %86 = arith.divf %85, %84 : vector<8x32xf32>
    %87 = arith.mulf %79, %86 : vector<8x32xf32>
    %88 = arith.truncf %47 : vector<8x32xf32> to vector<8x32xbf16>
    %c0_43 = arith.constant 0 : index
    %c0_44 = arith.constant 0 : index
    %89 = vector.load %arg6[%c0_43, %c0_44] : memref<32x2xbf16, #tpu.memory_space<vmem>>, vector<32x2xbf16>
    %cst_45 = arith.constant dense<0.000000e+00> : vector<8x2xf32>
    %90 = tpu.matmul %88, %89, %cst_45 {dimension_numbers = #tpu.dot_dimension_numbers<[1], [0], [0], [1], [0, 0, 1, 1], [], []>} : vector<8x32xbf16>, vector<32x2xbf16>, vector<8x2xf32> -> vector<8x2xf32>
    %c0_46 = arith.constant 0 : index
    %c0_47 = arith.constant 0 : index
    %91 = vector.load %arg7[%c0_46, %c0_47] : memref<32x16xbf16, #tpu.memory_space<vmem>>, vector<32x16xbf16>
    %cst_48 = arith.constant dense<0.000000e+00> : vector<8x16xf32>
    %92 = tpu.matmul %88, %91, %cst_48 {dimension_numbers = #tpu.dot_dimension_numbers<[1], [0], [0], [1], [0, 0, 1, 1], [], []>} : vector<8x32xbf16>, vector<32x16xbf16>, vector<8x16xf32> -> vector<8x16xf32>
    %c0_49 = arith.constant 0 : index
    %c0_50 = arith.constant 0 : index
    %93 = vector.load %arg18[%c0_49, %c0_50] : memref<8x16xf32, #tpu.memory_space<vmem>>, vector<8x16xf32>
    tpu.vector_store %arg18[%c0_49, %c0_50], %92 {strides = array<i32>} : memref<8x16xf32, #tpu.memory_space<vmem>>, vector<8x16xf32>,
    %c0_51 = arith.constant 0 : index
    %c0_52 = arith.constant 0 : index
    %94 = vector.load %arg8[%c0_51, %c0_52] : memref<32x16xbf16, #tpu.memory_space<vmem>>, vector<32x16xbf16>
    %cst_53 = arith.constant dense<0.000000e+00> : vector<8x16xf32>
    %95 = tpu.matmul %88, %94, %cst_53 {dimension_numbers = #tpu.dot_dimension_numbers<[1], [0], [0], [1], [0, 0, 1, 1], [], []>} : vector<8x32xbf16>, vector<32x16xbf16>, vector<8x16xf32> -> vector<8x16xf32>
    %c0_54 = arith.constant 0 : index
    %c0_55 = arith.constant 0 : index
    %96 = vector.load %arg19[%c0_54, %c0_55] : memref<8x16xf32, #tpu.memory_space<vmem>>, vector<8x16xf32>
    tpu.vector_store %arg19[%c0_54, %c0_55], %95 {strides = array<i32>} : memref<8x16xf32, #tpu.memory_space<vmem>>, vector<8x16xf32>,
    %97 = arith.truncf %90 : vector<8x2xf32> to vector<8x2xbf16>
    %c0_56 = arith.constant 0 : index
    %c0_57 = arith.constant 0 : index
    %98 = vector.load %arg9[%c0_56, %c0_57] : memref<2x32xbf16, #tpu.memory_space<vmem>>, vector<2x32xbf16>
    %cst_58 = arith.constant dense<0.000000e+00> : vector<8x32xf32>
    %99 = tpu.matmul %97, %98, %cst_58 {dimension_numbers = #tpu.dot_dimension_numbers<[1], [0], [0], [1], [0, 0, 1, 1], [], []>} : vector<8x2xbf16>, vector<2x32xbf16>, vector<8x32xf32> -> vector<8x32xf32>
    %c0_59 = arith.constant 0 : index
    %c0_60 = arith.constant 0 : index
    %100 = vector.load %arg10[%c0_59, %c0_60] : memref<1x32xf32, #tpu.memory_space<vmem>>, vector<1x32xf32>
    %cst_61 = arith.constant 2.000000e+00 : f32
    %101 = vector.broadcast %cst_61 : f32 to vector<1x32xf32>
    %102 = arith.mulf %101, %100 : vector<1x32xf32>
    %103 = vector.broadcast %102 : vector<1x32xf32> to vector<8x32xf32>
    %104 = arith.addf %99, %103 : vector<8x32xf32>
    %cst_62 = arith.constant 2.000000e+01 : f32
    %105 = vector.broadcast %cst_62 : f32 to vector<8x32xf32>
    %106 = arith.cmpf ogt, %104, %105 : vector<8x32xf32>
    %cst_63 = arith.constant 2.000000e+01 : f32
    %107 = vector.broadcast %cst_63 : f32 to vector<8x32xf32>
    %108 = arith.minimumf %104, %107 : vector<8x32xf32>
    %109 = math.exp %108 : vector<8x32xf32>
    %cst_64 = arith.constant 1.000000e+00 : f32
    %110 = vector.broadcast %cst_64 : f32 to vector<8x32xf32>
    %111 = arith.addf %110, %109 : vector<8x32xf32>
    %112 = math.log %111 : vector<8x32xf32>
    %113 = arith.select %106, %104, %112 : vector<8x32xi1>, vector<8x32xf32>
    %c0_65 = arith.constant 0 : index
    %c0_66 = arith.constant 0 : index
    %114 = vector.load %arg16[%c0_65, %c0_66] : memref<8x32xf32, #tpu.memory_space<vmem>>, vector<8x32xf32>
    tpu.vector_store %arg16[%c0_65, %c0_66], %113 {strides = array<i32>} : memref<8x32xf32, #tpu.memory_space<vmem>>, vector<8x32xf32>,
    %115 = arith.mulf %113, %47 : vector<8x32xf32>
    %c0_67 = arith.constant 0 : index
    %c0_68 = arith.constant 0 : index
    %116 = vector.load %arg17[%c0_67, %c0_68] : memref<8x32xf32, #tpu.memory_space<vmem>>, vector<8x32xf32>
    tpu.vector_store %arg17[%c0_67, %c0_68], %115 {strides = array<i32>} : memref<8x32xf32, #tpu.memory_space<vmem>>, vector<8x32xf32>,
    %c0_69 = arith.constant 0 : index
    %c0_70 = arith.constant 0 : index
    %117 = vector.load %arg11[%c0_69, %c0_70] : memref<16x32xf32, #tpu.memory_space<vmem>>, vector<16x32xf32>
    %118 = math.exp %117 : vector<16x32xf32>
    %cst_71 = arith.constant 0.000000e+00 : f32
    %119 = vector.broadcast %cst_71 : f32 to vector<16x32xf32>
    %120 = arith.subf %119, %118 : vector<16x32xf32>
    %cst_72 = arith.constant 0.000000e+00 : f32
    %121 = vector.broadcast %cst_72 : f32 to vector<16x32xf32>
    %c0_i32 = arith.constant 0 : i32
    %c8_i32 = arith.constant 8 : i32
    %122 = arith.muli %c0_i32, %c8_i32 : i32
    %123 = tpu.assume_multiple %122, 8 : i32
    %124 = arith.index_cast %123 : i32 to index
    %c0_73 = arith.constant 0 : index
    %125 = vector.load %arg16[%124, %c0_73] : memref<8x32xf32, #tpu.memory_space<vmem>>, vector<8x32xf32>
    %126 = arith.index_cast %123 : i32 to index
    %c0_74 = arith.constant 0 : index
    %127 = vector.load %arg17[%126, %c0_74] : memref<8x32xf32, #tpu.memory_space<vmem>>, vector<8x32xf32>
    %128 = arith.index_cast %123 : i32 to index
    %c0_75 = arith.constant 0 : index
    %129 = vector.load %arg18[%128, %c0_75] : memref<8x16xf32, #tpu.memory_space<vmem>>, vector<8x16xf32>
    %130 = arith.index_cast %123 : i32 to index
    %c0_76 = arith.constant 0 : index
    %131 = vector.load %arg19[%130, %c0_76] : memref<8x16xf32, #tpu.memory_space<vmem>>, vector<8x16xf32>
    %132 = vector.shape_cast %125 : vector<8x32xf32> to vector<8x1x32xf32>
    %133 = vector.shape_cast %120 : vector<16x32xf32> to vector<1x16x32xf32>
    %134 = vector.broadcast %132 : vector<8x1x32xf32> to vector<8x16x32xf32>
    %135 = vector.broadcast %133 : vector<1x16x32xf32> to vector<8x16x32xf32>
    %136 = arith.mulf %134, %135 : vector<8x16x32xf32>
    %137 = math.exp %136 : vector<8x16x32xf32>
    %c0_77 = arith.constant 0 : index
    %c0_78 = arith.constant 0 : index
    %c0_79 = arith.constant 0 : index
    %138 = vector.load %arg21[%c0_77, %c0_78, %c0_79] : memref<8x16x32xf32, #tpu.memory_space<vmem>>, vector<8x16x32xf32>
    tpu.vector_store %arg21[%c0_77, %c0_78, %c0_79], %137 {strides = array<i32>} : memref<8x16x32xf32, #tpu.memory_space<vmem>>, vector<8x16x32xf32>,
    %139 = vector.shape_cast %129 : vector<8x16xf32> to vector<8x16x1xf32>
    %140 = vector.shape_cast %127 : vector<8x32xf32> to vector<8x1x32xf32>
    %141 = vector.broadcast %139 : vector<8x16x1xf32> to vector<8x16x32xf32>
    %142 = vector.broadcast %140 : vector<8x1x32xf32> to vector<8x16x32xf32>
    %143 = arith.mulf %141, %142 : vector<8x16x32xf32>
    %c0_80 = arith.constant 0 : index
    %c0_81 = arith.constant 0 : index
    %c0_82 = arith.constant 0 : index
    %144 = vector.load %arg22[%c0_80, %c0_81, %c0_82] : memref<8x16x32xf32, #tpu.memory_space<vmem>>, vector<8x16x32xf32>
    tpu.vector_store %arg22[%c0_80, %c0_81, %c0_82], %143 {strides = array<i32>} : memref<8x16x32xf32, #tpu.memory_space<vmem>>, vector<8x16x32xf32>,
    %c0_83 = arith.constant 0 : index
    %c0_84 = arith.constant 0 : index
    %c0_85 = arith.constant 0 : index
    %145 = vector.load %arg21[%c0_83, %c0_84, %c0_85] : memref<8x16x32xf32, #tpu.memory_space<vmem>>, vector<1x16x32xf32>
    %146 = vector.shape_cast %145 : vector<1x16x32xf32> to vector<16x32xf32>
    %147 = arith.mulf %146, %121 : vector<16x32xf32>
    %c0_86 = arith.constant 0 : index
    %c0_87 = arith.constant 0 : index
    %c0_88 = arith.constant 0 : index
    %148 = vector.load %arg22[%c0_86, %c0_87, %c0_88] : memref<8x16x32xf32, #tpu.memory_space<vmem>>, vector<1x16x32xf32>
    %149 = vector.shape_cast %148 : vector<1x16x32xf32> to vector<16x32xf32>
    %150 = arith.addf %147, %149 : vector<16x32xf32>
    %c0_89 = arith.constant 0 : index
    %c0_90 = arith.constant 0 : index
    %c0_91 = arith.constant 0 : index
    %151 = vector.load %arg23[%c0_89, %c0_90, %c0_91] : memref<8x16x32xf32, #tpu.memory_space<vmem>>, vector<1x16x32xf32>
    %152 = vector.shape_cast %151 : vector<1x16x32xf32> to vector<16x32xf32>
    %153 = vector.shape_cast %150 : vector<16x32xf32> to vector<1x16x32xf32>
    tpu.vector_store %arg23[%c0_89, %c0_90, %c0_91], %153 {strides = array<i32>} : memref<8x16x32xf32, #tpu.memory_space<vmem>>, vector<1x16x32xf32>,
    %c1_92 = arith.constant 1 : index
    %c0_93 = arith.constant 0 : index
    %c0_94 = arith.constant 0 : index
    %154 = vector.load %arg21[%c1_92, %c0_93, %c0_94] : memref<8x16x32xf32, #tpu.memory_space<vmem>>, vector<1x16x32xf32>
    %155 = vector.shape_cast %154 : vector<1x16x32xf32> to vector<16x32xf32>
    %156 = arith.mulf %155, %150 : vector<16x32xf32>
    %c1_95 = arith.constant 1 : index
    %c0_96 = arith.constant 0 : index
    %c0_97 = arith.constant 0 : index
    %157 = vector.load %arg22[%c1_95, %c0_96, %c0_97] : memref<8x16x32xf32, #tpu.memory_space<vmem>>, vector<1x16x32xf32>
    %158 = vector.shape_cast %157 : vector<1x16x32xf32> to vector<16x32xf32>
    %159 = arith.addf %156, %158 : vector<16x32xf32>
    %c1_98 = arith.constant 1 : index
    %c0_99 = arith.constant 0 : index
    %c0_100 = arith.constant 0 : index
    %160 = vector.load %arg23[%c1_98, %c0_99, %c0_100] : memref<8x16x32xf32, #tpu.memory_space<vmem>>, vector<1x16x32xf32>
    %161 = vector.shape_cast %160 : vector<1x16x32xf32> to vector<16x32xf32>
    %162 = vector.shape_cast %159 : vector<16x32xf32> to vector<1x16x32xf32>
    tpu.vector_store %arg23[%c1_98, %c0_99, %c0_100], %162 {strides = array<i32>} : memref<8x16x32xf32, #tpu.memory_space<vmem>>, vector<1x16x32xf32>,
    %c2_101 = arith.constant 2 : index
    %c0_102 = arith.constant 0 : index
    %c0_103 = arith.constant 0 : index
    %163 = vector.load %arg21[%c2_101, %c0_102, %c0_103] : memref<8x16x32xf32, #tpu.memory_space<vmem>>, vector<1x16x32xf32>
    %164 = vector.shape_cast %163 : vector<1x16x32xf32> to vector<16x32xf32>
    %165 = arith.mulf %164, %159 : vector<16x32xf32>
    %c2_104 = arith.constant 2 : index
    %c0_105 = arith.constant 0 : index
    %c0_106 = arith.constant 0 : index
    %166 = vector.load %arg22[%c2_104, %c0_105, %c0_106] : memref<8x16x32xf32, #tpu.memory_space<vmem>>, vector<1x16x32xf32>
    %167 = vector.shape_cast %166 : vector<1x16x32xf32> to vector<16x32xf32>
    %168 = arith.addf %165, %167 : vector<16x32xf32>
    %c2_107 = arith.constant 2 : index
    %c0_108 = arith.constant 0 : index
    %c0_109 = arith.constant 0 : index
    %169 = vector.load %arg23[%c2_107, %c0_108, %c0_109] : memref<8x16x32xf32, #tpu.memory_space<vmem>>, vector<1x16x32xf32>
    %170 = vector.shape_cast %169 : vector<1x16x32xf32> to vector<16x32xf32>
    %171 = vector.shape_cast %168 : vector<16x32xf32> to vector<1x16x32xf32>
    tpu.vector_store %arg23[%c2_107, %c0_108, %c0_109], %171 {strides = array<i32>} : memref<8x16x32xf32, #tpu.memory_space<vmem>>, vector<1x16x32xf32>,
    %c3_110 = arith.constant 3 : index
    %c0_111 = arith.constant 0 : index
    %c0_112 = arith.constant 0 : index
    %172 = vector.load %arg21[%c3_110, %c0_111, %c0_112] : memref<8x16x32xf32, #tpu.memory_space<vmem>>, vector<1x16x32xf32>
    %173 = vector.shape_cast %172 : vector<1x16x32xf32> to vector<16x32xf32>
    %174 = arith.mulf %173, %168 : vector<16x32xf32>
    %c3_113 = arith.constant 3 : index
    %c0_114 = arith.constant 0 : index
    %c0_115 = arith.constant 0 : index
    %175 = vector.load %arg22[%c3_113, %c0_114, %c0_115] : memref<8x16x32xf32, #tpu.memory_space<vmem>>, vector<1x16x32xf32>
    %176 = vector.shape_cast %175 : vector<1x16x32xf32> to vector<16x32xf32>
    %177 = arith.addf %174, %176 : vector<16x32xf32>
    %c3_116 = arith.constant 3 : index
    %c0_117 = arith.constant 0 : index
    %c0_118 = arith.constant 0 : index
    %178 = vector.load %arg23[%c3_116, %c0_117, %c0_118] : memref<8x16x32xf32, #tpu.memory_space<vmem>>, vector<1x16x32xf32>
    %179 = vector.shape_cast %178 : vector<1x16x32xf32> to vector<16x32xf32>
    %180 = vector.shape_cast %177 : vector<16x32xf32> to vector<1x16x32xf32>
    tpu.vector_store %arg23[%c3_116, %c0_117, %c0_118], %180 {strides = array<i32>} : memref<8x16x32xf32, #tpu.memory_space<vmem>>, vector<1x16x32xf32>,
    %c4 = arith.constant 4 : index
    %c0_119 = arith.constant 0 : index
    %c0_120 = arith.constant 0 : index
    %181 = vector.load %arg21[%c4, %c0_119, %c0_120] : memref<8x16x32xf32, #tpu.memory_space<vmem>>, vector<1x16x32xf32>
    %182 = vector.shape_cast %181 : vector<1x16x32xf32> to vector<16x32xf32>
    %183 = arith.mulf %182, %177 : vector<16x32xf32>
    %c4_121 = arith.constant 4 : index
    %c0_122 = arith.constant 0 : index
    %c0_123 = arith.constant 0 : index
    %184 = vector.load %arg22[%c4_121, %c0_122, %c0_123] : memref<8x16x32xf32, #tpu.memory_space<vmem>>, vector<1x16x32xf32>
    %185 = vector.shape_cast %184 : vector<1x16x32xf32> to vector<16x32xf32>
    %186 = arith.addf %183, %185 : vector<16x32xf32>
    %c4_124 = arith.constant 4 : index
    %c0_125 = arith.constant 0 : index
    %c0_126 = arith.constant 0 : index
    %187 = vector.load %arg23[%c4_124, %c0_125, %c0_126] : memref<8x16x32xf32, #tpu.memory_space<vmem>>, vector<1x16x32xf32>
    %188 = vector.shape_cast %187 : vector<1x16x32xf32> to vector<16x32xf32>
    %189 = vector.shape_cast %186 : vector<16x32xf32> to vector<1x16x32xf32>
    tpu.vector_store %arg23[%c4_124, %c0_125, %c0_126], %189 {strides = array<i32>} : memref<8x16x32xf32, #tpu.memory_space<vmem>>, vector<1x16x32xf32>,
    %c5 = arith.constant 5 : index
    %c0_127 = arith.constant 0 : index
    %c0_128 = arith.constant 0 : index
    %190 = vector.load %arg21[%c5, %c0_127, %c0_128] : memref<8x16x32xf32, #tpu.memory_space<vmem>>, vector<1x16x32xf32>
    %191 = vector.shape_cast %190 : vector<1x16x32xf32> to vector<16x32xf32>
    %192 = arith.mulf %191, %186 : vector<16x32xf32>
    %c5_129 = arith.constant 5 : index
    %c0_130 = arith.constant 0 : index
    %c0_131 = arith.constant 0 : index
    %193 = vector.load %arg22[%c5_129, %c0_130, %c0_131] : memref<8x16x32xf32, #tpu.memory_space<vmem>>, vector<1x16x32xf32>
    %194 = vector.shape_cast %193 : vector<1x16x32xf32> to vector<16x32xf32>
    %195 = arith.addf %192, %194 : vector<16x32xf32>
    %c5_132 = arith.constant 5 : index
    %c0_133 = arith.constant 0 : index
    %c0_134 = arith.constant 0 : index
    %196 = vector.load %arg23[%c5_132, %c0_133, %c0_134] : memref<8x16x32xf32, #tpu.memory_space<vmem>>, vector<1x16x32xf32>
    %197 = vector.shape_cast %196 : vector<1x16x32xf32> to vector<16x32xf32>
    %198 = vector.shape_cast %195 : vector<16x32xf32> to vector<1x16x32xf32>
    tpu.vector_store %arg23[%c5_132, %c0_133, %c0_134], %198 {strides = array<i32>} : memref<8x16x32xf32, #tpu.memory_space<vmem>>, vector<1x16x32xf32>,
    %c6 = arith.constant 6 : index
    %c0_135 = arith.constant 0 : index
    %c0_136 = arith.constant 0 : index
    %199 = vector.load %arg21[%c6, %c0_135, %c0_136] : memref<8x16x32xf32, #tpu.memory_space<vmem>>, vector<1x16x32xf32>
    %200 = vector.shape_cast %199 : vector<1x16x32xf32> to vector<16x32xf32>
    %201 = arith.mulf %200, %195 : vector<16x32xf32>
    %c6_137 = arith.constant 6 : index
    %c0_138 = arith.constant 0 : index
    %c0_139 = arith.constant 0 : index
    %202 = vector.load %arg22[%c6_137, %c0_138, %c0_139] : memref<8x16x32xf32, #tpu.memory_space<vmem>>, vector<1x16x32xf32>
    %203 = vector.shape_cast %202 : vector<1x16x32xf32> to vector<16x32xf32>
    %204 = arith.addf %201, %203 : vector<16x32xf32>
    %c6_140 = arith.constant 6 : index
    %c0_141 = arith.constant 0 : index
    %c0_142 = arith.constant 0 : index
    %205 = vector.load %arg23[%c6_140, %c0_141, %c0_142] : memref<8x16x32xf32, #tpu.memory_space<vmem>>, vector<1x16x32xf32>
    %206 = vector.shape_cast %205 : vector<1x16x32xf32> to vector<16x32xf32>
    %207 = vector.shape_cast %204 : vector<16x32xf32> to vector<1x16x32xf32>
    tpu.vector_store %arg23[%c6_140, %c0_141, %c0_142], %207 {strides = array<i32>} : memref<8x16x32xf32, #tpu.memory_space<vmem>>, vector<1x16x32xf32>,
    %c7 = arith.constant 7 : index
    %c0_143 = arith.constant 0 : index
    %c0_144 = arith.constant 0 : index
    %208 = vector.load %arg21[%c7, %c0_143, %c0_144] : memref<8x16x32xf32, #tpu.memory_space<vmem>>, vector<1x16x32xf32>
    %209 = vector.shape_cast %208 : vector<1x16x32xf32> to vector<16x32xf32>
    %210 = arith.mulf %209, %204 : vector<16x32xf32>
    %c7_145 = arith.constant 7 : index
    %c0_146 = arith.constant 0 : index
    %c0_147 = arith.constant 0 : index
    %211 = vector.load %arg22[%c7_145, %c0_146, %c0_147] : memref<8x16x32xf32, #tpu.memory_space<vmem>>, vector<1x16x32xf32>
    %212 = vector.shape_cast %211 : vector<1x16x32xf32> to vector<16x32xf32>
    %213 = arith.addf %210, %212 : vector<16x32xf32>
    %c7_148 = arith.constant 7 : index
    %c0_149 = arith.constant 0 : index
    %c0_150 = arith.constant 0 : index
    %214 = vector.load %arg23[%c7_148, %c0_149, %c0_150] : memref<8x16x32xf32, #tpu.memory_space<vmem>>, vector<1x16x32xf32>
    %215 = vector.shape_cast %214 : vector<1x16x32xf32> to vector<16x32xf32>
    %216 = vector.shape_cast %213 : vector<16x32xf32> to vector<1x16x32xf32>
    tpu.vector_store %arg23[%c7_148, %c0_149, %c0_150], %216 {strides = array<i32>} : memref<8x16x32xf32, #tpu.memory_space<vmem>>, vector<1x16x32xf32>,
    %217 = vector.shape_cast %131 : vector<8x16xf32> to vector<8x16x1xf32>
    %c0_151 = arith.constant 0 : index
    %c0_152 = arith.constant 0 : index
    %c0_153 = arith.constant 0 : index
    %218 = vector.load %arg23[%c0_151, %c0_152, %c0_153] : memref<8x16x32xf32, #tpu.memory_space<vmem>>, vector<8x16x32xf32>
    %219 = vector.broadcast %217 : vector<8x16x1xf32> to vector<8x16x32xf32>
    %220 = arith.mulf %219, %218 : vector<8x16x32xf32>
    %cst_154 = arith.constant dense<0.000000e+00> : vector<8x32xf32>
    %221 = vector.multi_reduction <add>, %220, %cst_154 [1] : vector<8x16x32xf32> to vector<8x32xf32>
    %222 = arith.index_cast %123 : i32 to index
    %c0_155 = arith.constant 0 : index
    %223 = vector.load %arg20[%222, %c0_155] : memref<8x32xf32, #tpu.memory_space<vmem>>, vector<8x32xf32>
    tpu.vector_store %arg20[%222, %c0_155], %221 {strides = array<i32>} : memref<8x32xf32, #tpu.memory_space<vmem>>, vector<8x32xf32>,
    %c1_i32_156 = arith.constant 1 : i32
    %c0_157 = arith.constant 0 : index
    %c0_158 = arith.constant 0 : index
    %224 = vector.load %arg20[%c0_157, %c0_158] : memref<8x32xf32, #tpu.memory_space<vmem>>, vector<8x32xf32>
    %c0_159 = arith.constant 0 : index
    %c0_160 = arith.constant 0 : index
    %225 = vector.load %arg12[%c0_159, %c0_160] : memref<1x32xf32, #tpu.memory_space<vmem>>, vector<1x32xf32>
    %226 = vector.broadcast %225 : vector<1x32xf32> to vector<8x32xf32>
    %227 = arith.mulf %226, %47 : vector<8x32xf32>
    %228 = arith.addf %224, %227 : vector<8x32xf32>
    %229 = arith.truncf %228 : vector<8x32xf32> to vector<8x32xbf16>
    %c0_161 = arith.constant 0 : index
    %c0_162 = arith.constant 0 : index
    %230 = vector.load %arg13[%c0_161, %c0_162] : memref<32x32xbf16, #tpu.memory_space<vmem>>, vector<32x32xbf16>
    %cst_163 = arith.constant dense<0.000000e+00> : vector<8x32xf32>
    %231 = tpu.matmul %229, %230, %cst_163 {dimension_numbers = #tpu.dot_dimension_numbers<[1], [0], [0], [1], [0, 0, 1, 1], [], []>} : vector<8x32xbf16>, vector<32x32xbf16>, vector<8x32xf32> -> vector<8x32xf32>
    %232 = arith.truncf %87 : vector<8x32xf32> to vector<8x32xbf16>
    %c0_164 = arith.constant 0 : index
    %c0_165 = arith.constant 0 : index
    %233 = vector.load %arg14[%c0_164, %c0_165] : memref<32x32xbf16, #tpu.memory_space<vmem>>, vector<32x32xbf16>
    %cst_166 = arith.constant dense<0.000000e+00> : vector<8x32xf32>
    %234 = tpu.matmul %232, %233, %cst_166 {dimension_numbers = #tpu.dot_dimension_numbers<[1], [0], [0], [1], [0, 0, 1, 1], [], []>} : vector<8x32xbf16>, vector<32x32xbf16>, vector<8x32xf32> -> vector<8x32xf32>
    %235 = arith.addf %231, %234 : vector<8x32xf32>
    %c0_167 = arith.constant 0 : index
    %c0_168 = arith.constant 0 : index
    %c0_169 = arith.constant 0 : index
    %236 = vector.load %arg15[%c0_167, %c0_168, %c0_169] : memref<1x8x32xf32, #tpu.memory_space<vmem>>, vector<1x8x32xf32>
    %237 = vector.shape_cast %236 : vector<1x8x32xf32> to vector<8x32xf32>
    %238 = vector.shape_cast %235 : vector<8x32xf32> to vector<1x8x32xf32>
    tpu.vector_store %arg15[%c0_167, %c0_168, %c0_169], %238 {strides = array<i32>} : memref<1x8x32xf32, #tpu.memory_space<vmem>>, vector<1x8x32xf32>,
    return
  }
  func.func @transform_0(%arg0: i32) -> (i32, i32, i32) {
    %c0_i32 = arith.constant 0 : i32
    %c0_i32_0 = arith.constant 0 : i32
    %c0_i32_1 = arith.constant 0 : i32
    return %arg0, %c0_i32, %c0_i32_0 : i32, i32, i32
  }
  func.func @transform_1(%arg0: i32) -> (i32, i32) {
    %c0_i32 = arith.constant 0 : i32
    %c0_i32_0 = arith.constant 0 : i32
    %c0_i32_1 = arith.constant 0 : i32
    return %c0_i32, %c0_i32_0 : i32, i32
  }
  func.func @transform_2(%arg0: i32) -> (i32, i32) {
    %c0_i32 = arith.constant 0 : i32
    %c0_i32_0 = arith.constant 0 : i32
    %c0_i32_1 = arith.constant 0 : i32
    return %c0_i32, %c0_i32_0 : i32, i32
  }
  func.func @transform_3(%arg0: i32) -> (i32, i32) {
    %c0_i32 = arith.constant 0 : i32
    %c0_i32_0 = arith.constant 0 : i32
    %c0_i32_1 = arith.constant 0 : i32
    return %c0_i32, %c0_i32_0 : i32, i32
  }
  func.func @transform_4(%arg0: i32) -> (i32, i32) {
    %c0_i32 = arith.constant 0 : i32
    %c0_i32_0 = arith.constant 0 : i32
    %c0_i32_1 = arith.constant 0 : i32
    return %c0_i32, %c0_i32_0 : i32, i32
  }
  func.func @transform_5(%arg0: i32) -> (i32, i32) {
    %c0_i32 = arith.constant 0 : i32
    %c0_i32_0 = arith.constant 0 : i32
    %c0_i32_1 = arith.constant 0 : i32
    return %c0_i32, %c0_i32_0 : i32, i32
  }
  func.func @transform_6(%arg0: i32) -> (i32, i32) {
    %c0_i32 = arith.constant 0 : i32
    %c0_i32_0 = arith.constant 0 : i32
    %c0_i32_1 = arith.constant 0 : i32
    return %c0_i32, %c0_i32_0 : i32, i32
  }
  func.func @transform_7(%arg0: i32) -> (i32, i32) {
    %c0_i32 = arith.constant 0 : i32
    %c0_i32_0 = arith.constant 0 : i32
    %c0_i32_1 = arith.constant 0 : i32
    return %c0_i32, %c0_i32_0 : i32, i32
  }
  func.func @transform_8(%arg0: i32) -> (i32, i32) {
    %c0_i32 = arith.constant 0 : i32
    %c0_i32_0 = arith.constant 0 : i32
    %c0_i32_1 = arith.constant 0 : i32
    return %c0_i32, %c0_i32_0 : i32, i32
  }
  func.func @transform_9(%arg0: i32) -> (i32, i32) {
    %c0_i32 = arith.constant 0 : i32
    %c0_i32_0 = arith.constant 0 : i32
    %c0_i32_1 = arith.constant 0 : i32
    return %c0_i32, %c0_i32_0 : i32, i32
  }
  func.func @transform_10(%arg0: i32) -> (i32, i32) {
    %c0_i32 = arith.constant 0 : i32
    %c0_i32_0 = arith.constant 0 : i32
    %c0_i32_1 = arith.constant 0 : i32
    return %c0_i32, %c0_i32_0 : i32, i32
  }
  func.func @transform_11(%arg0: i32) -> (i32, i32) {
    %c0_i32 = arith.constant 0 : i32
    %c0_i32_0 = arith.constant 0 : i32
    %c0_i32_1 = arith.constant 0 : i32
    return %c0_i32, %c0_i32_0 : i32, i32
  }
  func.func @transform_12(%arg0: i32) -> (i32, i32) {
    %c0_i32 = arith.constant 0 : i32
    %c0_i32_0 = arith.constant 0 : i32
    %c0_i32_1 = arith.constant 0 : i32
    return %c0_i32, %c0_i32_0 : i32, i32
  }
  func.func @transform_13(%arg0: i32) -> (i32, i32) {
    %c0_i32 = arith.constant 0 : i32
    %c0_i32_0 = arith.constant 0 : i32
    %c0_i32_1 = arith.constant 0 : i32
    return %c0_i32, %c0_i32_0 : i32, i32
  }
  func.func @transform_14(%arg0: i32) -> (i32, i32, i32) {
    %c0_i32 = arith.constant 0 : i32
    %c0_i32_0 = arith.constant 0 : i32
    %c0_i32_1 = arith.constant 0 : i32
    return %arg0, %c0_i32, %c0_i32_0 : i32, i32, i32
  }
}

</mosaic_0001>

<llo_original>
// kernel: _lambda_.1
$region0: #{_lambda_.1}
  #allocation0 [shape = 'u32[]', space=smem, size = 0x4, offset = 0x4, fixed_abs, tag = 'smem constant byte address 0x4 - core index']
  #allocation1 [shape = 'u32[144,128]{1,0:T(1,128)}', space=vmem, size = 0x12000, scoped, tag = 'internal scratch']
  #allocation2 [shape = 'f32[8,32]{1,0:T(8,128)}', space=vmem, size = 0x1000, scoped, tag = 'scratch operand']
  #allocation3 [shape = 'f32[8,32]{1,0:T(8,128)}', space=vmem, size = 0x1000, scoped, tag = 'scratch operand']
  #allocation4 [shape = 'f32[8,16]{1,0:T(8,128)}', space=vmem, size = 0x1000, scoped, tag = 'scratch operand']
  #allocation5 [shape = 'f32[8,16]{1,0:T(8,128)}', space=vmem, size = 0x1000, scoped, tag = 'scratch operand']
  #allocation6 [shape = 'f32[8,32]{1,0:T(8,128)}', space=vmem, size = 0x1000, scoped, tag = 'scratch operand']
  #allocation7 [shape = 'f32[8,16,32]{2,1,0:T(8,128)}', space=vmem, size = 0x10000, scoped, tag = 'scratch operand']
  #allocation8 [shape = 'f32[8,16,32]{2,1,0:T(8,128)}', space=vmem, size = 0x10000, scoped, tag = 'scratch operand']
  #allocation9 [shape = 'f32[8,16,32]{2,1,0:T(8,128)}', space=vmem, size = 0x10000, scoped, tag = 'scratch operand']
  %s0 = inlined_call_operand.hbm [shape: f32[2,8,32], index: 0, kind: input, shape index: {}]
  %s1 = inlined_call_operand.hbm [shape: bf16[32,32], index: 1, kind: input, shape index: {}]
  %s2 = inlined_call_operand.hbm [shape: bf16[32,32], index: 2, kind: input, shape index: {}]
  %s3 = inlined_call_operand.vmem [shape: f32[4,32], index: 3, kind: input, shape index: {}]
  %s4 = inlined_call_operand.vmem [shape: f32[4,32], index: 4, kind: input, shape index: {}]
  %s5 = inlined_call_operand.hbm [shape: bf16[32,2], index: 5, kind: input, shape index: {}]
  %s6 = inlined_call_operand.hbm [shape: bf16[32,16], index: 6, kind: input, shape index: {}]
  %s7 = inlined_call_operand.hbm [shape: bf16[32,16], index: 7, kind: input, shape index: {}]
  %s8 = inlined_call_operand.hbm [shape: bf16[2,32], index: 8, kind: input, shape index: {}]
  %s9 = inlined_call_operand.vmem [shape: f32[1,32], index: 9, kind: input, shape index: {}]
  %s10 = inlined_call_operand.hbm [shape: f32[16,32], index: 10, kind: input, shape index: {}]
  %s11 = inlined_call_operand.vmem [shape: f32[1,32], index: 11, kind: input, shape index: {}]
  %s12 = inlined_call_operand.hbm [shape: bf16[32,32], index: 12, kind: input, shape index: {}]
  %s13 = inlined_call_operand.vmem [shape: bf16[32,32], index: 13, kind: input, shape index: {}]
  %s14 = inlined_call_operand.hbm [shape: f32[2,8,32], index: 14, kind: output, shape index: {}]
  %s15 = sld [smem:[#allocation0]]
  $region125: #{_lambda_.1} parent=0
    _
  %s17 = ssub.s32 1, %s15
  %s18 = scalar_select 0, %s17, %s15
  $region1: #{_lambda_.1} parent=0
    #allocation10 [shape = 'u8[8192]{0}', space=vmem, size = 0x2000, scoped, tag = 'input window, operand 0']
    #allocation11 [shape = 's32[2]{0}', space=sflag, size = 0x8, scoped, tag = 'scoped memory for _lambda_.1']
    #allocation12 [shape = 's32[2]{0}', space=sflag, size = 0x8, scoped, tag = 'scoped memory for _lambda_.1']
    #allocation13 [shape = 'u8[8192]{0}', space=vmem, size = 0x2000, scoped, tag = 'input window, operand 1, single buffered']
    #allocation14 [shape = 's32[1]{0}', space=sflag, size = 0x4, scoped, tag = 'scoped memory for _lambda_.1']
    #allocation15 [shape = 'u8[8192]{0}', space=vmem, size = 0x2000, scoped, tag = 'input window, operand 2, single buffered']
    #allocation16 [shape = 'u8[8192]{0}', space=vmem, size = 0x2000, scoped, tag = 'input window, operand 5, single buffered']
    #allocation17 [shape = 's32[1]{0}', space=sflag, size = 0x4, scoped, tag = 'scoped memory for _lambda_.1']
    #allocation18 [shape = 'u8[8192]{0}', space=vmem, size = 0x2000, scoped, tag = 'input window, operand 6, single buffered']
    #allocation19 [shape = 'u8[8192]{0}', space=vmem, size = 0x2000, scoped, tag = 'input window, operand 7, single buffered']
    #allocation20 [shape = 's32[1]{0}', space=sflag, size = 0x4, scoped, tag = 'scoped memory for _lambda_.1']
    #allocation21 [shape = 'u8[512]{0}', space=vmem, size = 0x400, scoped, tag = 'input window, operand 8, single buffered']
    #allocation22 [shape = 'u8[8192]{0}', space=vmem, size = 0x2000, scoped, tag = 'input window, operand 10, single buffered']
    #allocation23 [shape = 's32[1]{0}', space=sflag, size = 0x4, scoped, tag = 'scoped memory for _lambda_.1']
    #allocation24 [shape = 'u8[8192]{0}', space=vmem, size = 0x2000, scoped, tag = 'input window, operand 12, single buffered']
    #allocation25 [shape = 'u8[8192]{0}', space=vmem, size = 0x2000, scoped, tag = 'output window, operand 0']
    %19 = vsyncpa [#allocation11], 0
    %s20 = scalar_lea.sflag [#allocation11], 1
    %21 = vsyncpa %s20, 0
    %22 = vsyncpa [#allocation14], 0
    %23 = vsyncpa [#allocation17], 0
    %24 = vsyncpa [#allocation20], 0
    %25 = vsyncpa [#allocation23], 0
    %26 = vsyncpa [#allocation12], 0
    %s27 = scalar_lea.sflag [#allocation12], 1
    %28 = vsyncpa %s27, 0
    loop: start=0, step=1, limit=4
    $region2: #{_lambda_.1} parent=1 // loop_pre_header
      _
    $region3: #{_lambda_.1} parent=1 // loop_header
      %s30 = sphi 0, %s34
      %p31 = scmp.ge.s32.totalorder %s30, 4
      %s40 = sphi 0, %s42
      %s43 = sphi 0, %s40
      %s44 = sphi 0, %s43
      %s60 = sphi 0, %s44
      %s64 = sphi 0, %s64
      %s66 = sphi 0, %s64
      %s67 = sphi 0, %s66
      %s81 = sphi 0, %s67
      %s85 = sphi 0, %s85
      %s87 = sphi 0, %s85
      %s88 = sphi 0, %s87
      %s102 = sphi 0, %s88
      %s106 = sphi 0, %s106
      %s108 = sphi 0, %s106
      %s109 = sphi 0, %s108
      %s123 = sphi 0, %s109
      %s127 = sphi 0, %s127
      %s129 = sphi 0, %s127
      %s130 = sphi 0, %s129
      %s144 = sphi 0, %s130
      %s148 = sphi 0, %s148
      %s150 = sphi 0, %s148
      %s151 = sphi 0, %s150
      %s165 = sphi 0, %s151
      %s169 = sphi 0, %s169
      %s171 = sphi 0, %s169
      %s172 = sphi 0, %s171
      %s186 = sphi 0, %s172
      %s190 = sphi 0, %s190
      %s192 = sphi 0, %s190
      %s193 = sphi 0, %s192
      %s207 = sphi 0, %s193
      %s211 = sphi 0, %s211
      %s213 = sphi 0, %s211
      %s214 = sphi 0, %s213
      %s228 = sphi 0, %s214
      %s232 = sphi 0, %s232
      %s234 = sphi 0, %s232
      %s235 = sphi 0, %s234
      %s249 = sphi 0, %s235
      %s253 = sphi 0, %s253
      %s255 = sphi 0, %s253
      %s256 = sphi 0, %s255
      %s270 = sphi 0, %s256
      %s274 = sphi 0, %s274
      %s276 = sphi 0, %s274
      %s277 = sphi 0, %s276
      %s291 = sphi 0, %s277
      %s295 = sphi 0, %s295
      %s297 = sphi 0, %s295
      %s298 = sphi 0, %s297
      %s312 = sphi 0, %s298
      %s316 = sphi 0, %s316
      %s318 = sphi 0, %s316
      %s319 = sphi 0, %s318
      %s333 = sphi 0, %s319
      %s339 = sphi 0, %s341
      %s342 = sphi 0, %s339
      %s343 = sphi 0, %s342
      %s359 = sphi 0, %s343
    $region4: #{_lambda_.1} parent=1 // loop_header_branch
      %33 = sbr.rel (%p31) target = $region8
    $region5: #{_lambda_.1} parent=1 // loop_body
      %s35 = ssub.s32 %s30, 1
      %s36 = ssub.s32 %s30, 2
      %s37 = sadd.s32 %s30, 1
      %s38 = ssub.s32 %s30, %s37
      %p39 = scmp.eq.s32.totalorder %s38, 0
      %s41 = sadd.s32 %s40, 1
      %s42 = scalar_select %p39, %s40, %s41
      %p45 = pneg %p39
      %p46 = scmp.eq.s32.totalorder %s30, 1
      %p47 = por %p45, %p46
      %p48 = scmp.ne.s32.totalorder %s40, %s43
      %p49 = scmp.eq.s32.totalorder %s30, 0
      %p50 = por %p48, %p49
      %p51 = scmp.ne.s32.totalorder %s40, %s43
      %p52 = scmp.eq.s32.totalorder %s35, 1
      %p53 = por %p51, %p52
      %p54 = scmp.ne.s32.totalorder %s43, %s44
      %p55 = scmp.eq.s32.totalorder %s35, 0
      %p56 = por %p54, %p55
      %p57 = scmp.ne.s32.totalorder %s43, %s44
      %p58 = scmp.eq.s32.totalorder %s36, 1
      %p59 = por %p57, %p58
      %p61 = scmp.ne.s32.totalorder %s44, %s60
      %p62 = scmp.eq.s32.totalorder %s36, 0
      %p63 = por %p61, %p62
      %s65 = sadd.s32 %s64, 1
      %p68 = scmp.eq.s32.totalorder %s30, 1
      %p69 = scmp.ne.s32.totalorder %s64, %s66
      %p70 = scmp.eq.s32.totalorder %s30, 0
      %p71 = por %p69, %p70
      %p72 = scmp.ne.s32.totalorder %s64, %s66
      %p73 = scmp.eq.s32.totalorder %s35, 1
      %p74 = por %p72, %p73
      %p75 = scmp.ne.s32.totalorder %s66, %s67
      %p76 = scmp.eq.s32.totalorder %s35, 0
      %p77 = por %p75, %p76
      %p78 = scmp.ne.s32.totalorder %s66, %s67
      %p79 = scmp.eq.s32.totalorder %s36, 1
      %p80 = por %p78, %p79
      %p82 = scmp.ne.s32.totalorder %s67, %s81
      %p83 = scmp.eq.s32.totalorder %s36, 0
      %p84 = por %p82, %p83
      %s86 = sadd.s32 %s85, 1
      %p89 = scmp.eq.s32.totalorder %s30, 1
      %p90 = scmp.ne.s32.totalorder %s85, %s87
      %p91 = scmp.eq.s32.totalorder %s30, 0
      %p92 = por %p90, %p91
      %p93 = scmp.ne.s32.totalorder %s85, %s87
      %p94 = scmp.eq.s32.totalorder %s35, 1
      %p95 = por %p93, %p94
      %p96 = scmp.ne.s32.totalorder %s87, %s88
      %p97 = scmp.eq.s32.totalorder %s35, 0
      %p98 = por %p96, %p97
      %p99 = scmp.ne.s32.totalorder %s87, %s88
      %p100 = scmp.eq.s32.totalorder %s36, 1
      %p101 = por %p99, %p100
      %p103 = scmp.ne.s32.totalorder %s88, %s102
      %p104 = scmp.eq.s32.totalorder %s36, 0
      %p105 = por %p103, %p104
      %s107 = sadd.s32 %s106, 1
      %p110 = scmp.eq.s32.totalorder %s30, 1
      %p111 = scmp.ne.s32.totalorder %s106, %s108
      %p112 = scmp.eq.s32.totalorder %s30, 0
      %p113 = por %p111, %p112
      %p114 = scmp.ne.s32.totalorder %s106, %s108
      %p115 = scmp.eq.s32.totalorder %s35, 1
      %p116 = por %p114, %p115
      %p117 = scmp.ne.s32.totalorder %s108, %s109
      %p118 = scmp.eq.s32.totalorder %s35, 0
      %p119 = por %p117, %p118
      %p120 = scmp.ne.s32.totalorder %s108, %s109
      %p121 = scmp.eq.s32.totalorder %s36, 1
      %p122 = por %p120, %p121
      %p124 = scmp.ne.s32.totalorder %s109, %s123
      %p125 = scmp.eq.s32.totalorder %s36, 0
      %p126 = por %p124, %p125
      %s128 = sadd.s32 %s127, 1
      %p131 = scmp.eq.s32.totalorder %s30, 1
      %p132 = scmp.ne.s32.totalorder %s127, %s129
      %p133 = scmp.eq.s32.totalorder %s30, 0
      %p134 = por %p132, %p133
      %p135 = scmp.ne.s32.totalorder %s127, %s129
      %p136 = scmp.eq.s32.totalorder %s35, 1
      %p137 = por %p135, %p136
      %p138 = scmp.ne.s32.totalorder %s129, %s130
      %p139 = scmp.eq.s32.totalorder %s35, 0
      %p140 = por %p138, %p139
      %p141 = scmp.ne.s32.totalorder %s129, %s130
      %p142 = scmp.eq.s32.totalorder %s36, 1
      %p143 = por %p141, %p142
      %p145 = scmp.ne.s32.totalorder %s130, %s144
      %p146 = scmp.eq.s32.totalorder %s36, 0
      %p147 = por %p145, %p146
      %s149 = sadd.s32 %s148, 1
      %p152 = scmp.eq.s32.totalorder %s30, 1
      %p153 = scmp.ne.s32.totalorder %s148, %s150
      %p154 = scmp.eq.s32.totalorder %s30, 0
      %p155 = por %p153, %p154
      %p156 = scmp.ne.s32.totalorder %s148, %s150
      %p157 = scmp.eq.s32.totalorder %s35, 1
      %p158 = por %p156, %p157
      %p159 = scmp.ne.s32.totalorder %s150, %s151
      %p160 = scmp.eq.s32.totalorder %s35, 0
      %p161 = por %p159, %p160
      %p162 = scmp.ne.s32.totalorder %s150, %s151
      %p163 = scmp.eq.s32.totalorder %s36, 1
      %p164 = por %p162, %p163
      %p166 = scmp.ne.s32.totalorder %s151, %s165
      %p167 = scmp.eq.s32.totalorder %s36, 0
      %p168 = por %p166, %p167
      %s170 = sadd.s32 %s169, 1
      %p173 = scmp.eq.s32.totalorder %s30, 1
      %p174 = scmp.ne.s32.totalorder %s169, %s171
      %p175 = scmp.eq.s32.totalorder %s30, 0
      %p176 = por %p174, %p175
      %p177 = scmp.ne.s32.totalorder %s169, %s171
      %p178 = scmp.eq.s32.totalorder %s35, 1
      %p179 = por %p177, %p178
      %p180 = scmp.ne.s32.totalorder %s171, %s172
      %p181 = scmp.eq.s32.totalorder %s35, 0
      %p182 = por %p180, %p181
      %p183 = scmp.ne.s32.totalorder %s171, %s172
      %p184 = scmp.eq.s32.totalorder %s36, 1
      %p185 = por %p183, %p184
      %p187 = scmp.ne.s32.totalorder %s172, %s186
      %p188 = scmp.eq.s32.totalorder %s36, 0
      %p189 = por %p187, %p188
      %s191 = sadd.s32 %s190, 1
      %p194 = scmp.eq.s32.totalorder %s30, 1
      %p195 = scmp.ne.s32.totalorder %s190, %s192
      %p196 = scmp.eq.s32.totalorder %s30, 0
      %p197 = por %p195, %p196
      %p198 = scmp.ne.s32.totalorder %s190, %s192
      %p199 = scmp.eq.s32.totalorder %s35, 1
      %p200 = por %p198, %p199
      %p201 = scmp.ne.s32.totalorder %s192, %s193
      %p202 = scmp.eq.s32.totalorder %s35, 0
      %p203 = por %p201, %p202
      %p204 = scmp.ne.s32.totalorder %s192, %s193
      %p205 = scmp.eq.s32.totalorder %s36, 1
      %p206 = por %p204, %p205
      %p208 = scmp.ne.s32.totalorder %s193, %s207
      %p209 = scmp.eq.s32.totalorder %s36, 0
      %p210 = por %p208, %p209
      %s212 = sadd.s32 %s211, 1
      %p215 = scmp.eq.s32.totalorder %s30, 1
      %p216 = scmp.ne.s32.totalorder %s211, %s213
      %p217 = scmp.eq.s32.totalorder %s30, 0
      %p218 = por %p216, %p217
      %p219 = scmp.ne.s32.totalorder %s211, %s213
      %p220 = scmp.eq.s32.totalorder %s35, 1
      %p221 = por %p219, %p220
      %p222 = scmp.ne.s32.totalorder %s213, %s214
      %p223 = scmp.eq.s32.totalorder %s35, 0
      %p224 = por %p222, %p223
      %p225 = scmp.ne.s32.totalorder %s213, %s214
      %p226 = scmp.eq.s32.totalorder %s36, 1
      %p227 = por %p225, %p226
      %p229 = scmp.ne.s32.totalorder %s214, %s228
      %p230 = scmp.eq.s32.totalorder %s36, 0
      %p231 = por %p229, %p230
      %s233 = sadd.s32 %s232, 1
      %p236 = scmp.eq.s32.totalorder %s30, 1
      %p237 = scmp.ne.s32.totalorder %s232, %s234
      %p238 = scmp.eq.s32.totalorder %s30, 0
      %p239 = por %p237, %p238
      %p240 = scmp.ne.s32.totalorder %s232, %s234
      %p241 = scmp.eq.s32.totalorder %s35, 1
      %p242 = por %p240, %p241
      %p243 = scmp.ne.s32.totalorder %s234, %s235
      %p244 = scmp.eq.s32.totalorder %s35, 0
      %p245 = por %p243, %p244
      %p246 = scmp.ne.s32.totalorder %s234, %s235
      %p247 = scmp.eq.s32.totalorder %s36, 1
      %p248 = por %p246, %p247
      %p250 = scmp.ne.s32.totalorder %s235, %s249
      %p251 = scmp.eq.s32.totalorder %s36, 0
      %p252 = por %p250, %p251
      %s254 = sadd.s32 %s253, 1
      %p257 = scmp.eq.s32.totalorder %s30, 1
      %p258 = scmp.ne.s32.totalorder %s253, %s255
      %p259 = scmp.eq.s32.totalorder %s30, 0
      %p260 = por %p258, %p259
      %p261 = scmp.ne.s32.totalorder %s253, %s255
      %p262 = scmp.eq.s32.totalorder %s35, 1
      %p263 = por %p261, %p262
      %p264 = scmp.ne.s32.totalorder %s255, %s256
      %p265 = scmp.eq.s32.totalorder %s35, 0
      %p266 = por %p264, %p265
      %p267 = scmp.ne.s32.totalorder %s255, %s256
      %p268 = scmp.eq.s32.totalorder %s36, 1
      %p269 = por %p267, %p268
      %p271 = scmp.ne.s32.totalorder %s256, %s270
      %p272 = scmp.eq.s32.totalorder %s36, 0
      %p273 = por %p271, %p272
      %s275 = sadd.s32 %s274, 1
      %p278 = scmp.eq.s32.totalorder %s30, 1
      %p279 = scmp.ne.s32.totalorder %s274, %s276
      %p280 = scmp.eq.s32.totalorder %s30, 0
      %p281 = por %p279, %p280
      %p282 = scmp.ne.s32.totalorder %s274, %s276
      %p283 = scmp.eq.s32.totalorder %s35, 1
      %p284 = por %p282, %p283
      %p285 = scmp.ne.s32.totalorder %s276, %s277
      %p286 = scmp.eq.s32.totalorder %s35, 0
      %p287 = por %p285, %p286
      %p288 = scmp.ne.s32.totalorder %s276, %s277
      %p289 = scmp.eq.s32.totalorder %s36, 1
      %p290 = por %p288, %p289
      %p292 = scmp.ne.s32.totalorder %s277, %s291
      %p293 = scmp.eq.s32.totalorder %s36, 0
      %p294 = por %p292, %p293
      %s296 = sadd.s32 %s295, 1
      %p299 = scmp.eq.s32.totalorder %s30, 1
      %p300 = scmp.ne.s32.totalorder %s295, %s297
      %p301 = scmp.eq.s32.totalorder %s30, 0
      %p302 = por %p300, %p301
      %p303 = scmp.ne.s32.totalorder %s295, %s297
      %p304 = scmp.eq.s32.totalorder %s35, 1
      %p305 = por %p303, %p304
      %p306 = scmp.ne.s32.totalorder %s297, %s298
      %p307 = scmp.eq.s32.totalorder %s35, 0
      %p308 = por %p306, %p307
      %p309 = scmp.ne.s32.totalorder %s297, %s298
      %p310 = scmp.eq.s32.totalorder %s36, 1
      %p311 = por %p309, %p310
      %p313 = scmp.ne.s32.totalorder %s298, %s312
      %p314 = scmp.eq.s32.totalorder %s36, 0
      %p315 = por %p313, %p314
      %s317 = sadd.s32 %s316, 1
      %p320 = scmp.eq.s32.totalorder %s30, 1
      %p321 = scmp.ne.s32.totalorder %s316, %s318
      %p322 = scmp.eq.s32.totalorder %s30, 0
      %p323 = por %p321, %p322
      %p324 = scmp.ne.s32.totalorder %s316, %s318
      %p325 = scmp.eq.s32.totalorder %s35, 1
      %p326 = por %p324, %p325
      %p327 = scmp.ne.s32.totalorder %s318, %s319
      %p328 = scmp.eq.s32.totalorder %s35, 0
      %p329 = por %p327, %p328
      %p330 = scmp.ne.s32.totalorder %s318, %s319
      %p331 = scmp.eq.s32.totalorder %s36, 1
      %p332 = por %p330, %p331
      %p334 = scmp.ne.s32.totalorder %s319, %s333
      %p335 = scmp.eq.s32.totalorder %s36, 0
      %p336 = por %p334, %p335
      %s337 = ssub.s32 %s30, %s37
      %p338 = scmp.eq.s32.totalorder %s337, 0
      %s340 = sadd.s32 %s339, 1
      %s341 = scalar_select %p338, %s339, %s340
      %p344 = pneg %p338
      %p345 = scmp.eq.s32.totalorder %s30, 1
      %p346 = por %p344, %p345
      %p347 = scmp.ne.s32.totalorder %s339, %s342
      %p348 = scmp.eq.s32.totalorder %s30, 0
      %p349 = por %p347, %p348
      %p350 = scmp.ne.s32.totalorder %s339, %s342
      %p351 = scmp.eq.s32.totalorder %s35, 1
      %p352 = por %p350, %p351
      %p353 = scmp.ne.s32.totalorder %s342, %s343
      %p354 = scmp.eq.s32.totalorder %s35, 0
      %p355 = por %p353, %p354
      %p356 = scmp.ne.s32.totalorder %s342, %s343
      %p357 = scmp.eq.s32.totalorder %s36, 1
      %p358 = por %p356, %p357
      %p360 = scmp.ne.s32.totalorder %s343, %s359
      %p361 = scmp.eq.s32.totalorder %s36, 0
      %p362 = por %p360, %p361
      %p363 = scmp.le.s32.totalorder 1, %s30
      %p364 = scmp.lt.s32.totalorder %s30, 3
      %p365 = pnand %p363, %p364
      %p366 = pneg %p365
      // Predicated region
      $region9: #{_lambda_.1} parent=5 // pred_check
        _
      $region10: #{_lambda_.1} parent=5 // pred_check_branch
        %368 = sbr.rel (%p365) target = $region12
      $region11: #{_lambda_.1} parent=5 // pred_region
        %s369 = ssub.s32 %s30, 1
        // Predicated region
        $region13: #{_lambda_.1} parent=11 // pred_check
          %p370 = pneg %p77
        $region14: #{_lambda_.1} parent=11 // pred_check_branch
          %372 = sbr.rel (%p370) target = $region16
        $region15: #{_lambda_.1} parent=11 // pred_region
          %s374 = ssub.s32 256, 256
          %375 = vsyncadd [#allocation14], %s374
          %s376 = sshll.u32 [#allocation13], 4
          %s377 = int_to_ptr.vmem [resolvable:$true] %s376
          %382 = dma.hbm_to_vmem [thread:$0]  %s1, 256, %s377, [#allocation14], 64, 64, 4
        $region16: #{_lambda_.1} parent=11 // pred_fallthru
          _
        // Predicated region
        $region17: #{_lambda_.1} parent=11 // pred_check
          %p383 = pneg %p98
        $region18: #{_lambda_.1} parent=11 // pred_check_branch
          %385 = sbr.rel (%p383) target = $region20
        $region19: #{_lambda_.1} parent=11 // pred_region
          %s387 = ssub.s32 256, 256
          %388 = vsyncadd [#allocation14], %s387
          %s389 = sshll.u32 [#allocation15], 4
          %s390 = int_to_ptr.vmem [resolvable:$true] %s389
          %395 = dma.hbm_to_vmem [thread:$0]  %s2, 256, %s390, [#allocation14], 64, 64, 4
        $region20: #{_lambda_.1} parent=11 // pred_fallthru
          _
        // Predicated region
        $region21: #{_lambda_.1} parent=11 // pred_check
          %p396 = pneg %p119
        $region22: #{_lambda_.1} parent=11 // pred_check_branch
          %398 = sbr.rel (%p396) target = $region24
        $region23: #{_lambda_.1} parent=11 // pred_region
          _
        $region24: #{_lambda_.1} parent=11 // pred_fallthru
          _
        // Predicated region
        $region25: #{_lambda_.1} parent=11 // pred_check
          %p399 = pneg %p140
        $region26: #{_lambda_.1} parent=11 // pred_check_branch
          %401 = sbr.rel (%p399) target = $region28
        $region27: #{_lambda_.1} parent=11 // pred_region
          _
        $region28: #{_lambda_.1} parent=11 // pred_fallthru
          _
        // Predicated region
        $region29: #{_lambda_.1} parent=11 // pred_check
          %p402 = pneg %p161
        $region30: #{_lambda_.1} parent=11 // pred_check_branch
          %404 = sbr.rel (%p402) target = $region32
        $region31: #{_lambda_.1} parent=11 // pred_region
          %s406 = ssub.s32 256, 256
          %407 = vsyncadd [#allocation17], %s406
          %s408 = sshll.u32 [#allocation16], 4
          %s409 = int_to_ptr.vmem [resolvable:$true] %s408
          %414 = dma.hbm_to_vmem [thread:$0]  %s5, 256, %s409, [#allocation17], 64, 64, 4
        $region32: #{_lambda_.1} parent=11 // pred_fallthru
          _
        // Predicated region
        $region33: #{_lambda_.1} parent=11 // pred_check
          %p415 = pneg %p182
        $region34: #{_lambda_.1} parent=11 // pred_check_branch
          %417 = sbr.rel (%p415) target = $region36
        $region35: #{_lambda_.1} parent=11 // pred_region
          %s419 = ssub.s32 256, 256
          %420 = vsyncadd [#allocation17], %s419
          %s421 = sshll.u32 [#allocation18], 4
          %s422 = int_to_ptr.vmem [resolvable:$true] %s421
          %427 = dma.hbm_to_vmem [thread:$0]  %s6, 256, %s422, [#allocation17], 64, 64, 4
        $region36: #{_lambda_.1} parent=11 // pred_fallthru
          _
        // Predicated region
        $region37: #{_lambda_.1} parent=11 // pred_check
          %p428 = pneg %p203
        $region38: #{_lambda_.1} parent=11 // pred_check_branch
          %430 = sbr.rel (%p428) target = $region40
        $region39: #{_lambda_.1} parent=11 // pred_region
          %s432 = ssub.s32 256, 256
          %433 = vsyncadd [#allocation20], %s432
          %s434 = sshll.u32 [#allocation19], 4
          %s435 = int_to_ptr.vmem [resolvable:$true] %s434
          %440 = dma.hbm_to_vmem [thread:$0]  %s7, 256, %s435, [#allocation20], 64, 64, 4
        $region40: #{_lambda_.1} parent=11 // pred_fallthru
          _
        // Predicated region
        $region41: #{_lambda_.1} parent=11 // pred_check
          %p441 = pneg %p224
        $region42: #{_lambda_.1} parent=11 // pred_check_branch
          %443 = sbr.rel (%p441) target = $region44
        $region43: #{_lambda_.1} parent=11 // pred_region
          %s445 = ssub.s32 16, 16
          %446 = vsyncadd [#allocation20], %s445
          %s448 = sshll.u32 [#allocation21], 4
          %s449 = int_to_ptr.vmem [resolvable:$true] %s448
          %451 = dma.hbm_to_vmem [thread:$0]  %s8, 16, %s449, [#allocation20]
        $region44: #{_lambda_.1} parent=11 // pred_fallthru
          _
        // Predicated region
        $region45: #{_lambda_.1} parent=11 // pred_check
          %p452 = pneg %p245
        $region46: #{_lambda_.1} parent=11 // pred_check_branch
          %454 = sbr.rel (%p452) target = $region48
        $region47: #{_lambda_.1} parent=11 // pred_region
          _
        $region48: #{_lambda_.1} parent=11 // pred_fallthru
          _
        // Predicated region
        $region49: #{_lambda_.1} parent=11 // pred_check
          %p455 = pneg %p266
        $region50: #{_lambda_.1} parent=11 // pred_check_branch
          %457 = sbr.rel (%p455) target = $region52
        $region51: #{_lambda_.1} parent=11 // pred_region
          %s459 = ssub.s32 256, 256
          %460 = vsyncadd [#allocation23], %s459
          %s461 = sshll.u32 [#allocation22], 4
          %s462 = int_to_ptr.vmem [resolvable:$true] %s461
          %467 = dma.hbm_to_vmem [thread:$0]  %s10, 256, %s462, [#allocation23], 128, 128, 8
        $region52: #{_lambda_.1} parent=11 // pred_fallthru
          _
        // Predicated region
        $region53: #{_lambda_.1} parent=11 // pred_check
          %p468 = pneg %p287
        $region54: #{_lambda_.1} parent=11 // pred_check_branch
          %470 = sbr.rel (%p468) target = $region56
        $region55: #{_lambda_.1} parent=11 // pred_region
          _
        $region56: #{_lambda_.1} parent=11 // pred_fallthru
          _
        // Predicated region
        $region57: #{_lambda_.1} parent=11 // pred_check
          %p471 = pneg %p308
        $region58: #{_lambda_.1} parent=11 // pred_check_branch
          %473 = sbr.rel (%p471) target = $region60
        $region59: #{_lambda_.1} parent=11 // pred_region
          %s475 = ssub.s32 256, 256
          %476 = vsyncadd [#allocation23], %s475
          %s477 = sshll.u32 [#allocation24], 4
          %s478 = int_to_ptr.vmem [resolvable:$true] %s477
          %483 = dma.hbm_to_vmem [thread:$0]  %s12, 256, %s478, [#allocation23], 64, 64, 4
        $region60: #{_lambda_.1} parent=11 // pred_fallthru
          _
        // Predicated region
        $region61: #{_lambda_.1} parent=11 // pred_check
          %p484 = pneg %p329
        $region62: #{_lambda_.1} parent=11 // pred_check_branch
          %486 = sbr.rel (%p484) target = $region64
        $region63: #{_lambda_.1} parent=11 // pred_region
          _
        $region64: #{_lambda_.1} parent=11 // pred_fallthru
          _
      $region12: #{_lambda_.1} parent=5 // pred_fallthru
        _
      %p487 = scmp.lt.s32.totalorder %s30, 2
      // Predicated region
      $region65: #{_lambda_.1} parent=5 // pred_check
        %p488 = pneg %p487
      $region66: #{_lambda_.1} parent=5 // pred_check_branch
        %490 = sbr.rel (%p488) target = $region68
      $region67: #{_lambda_.1} parent=5 // pred_region
        // Predicated region
        $region69: #{_lambda_.1} parent=67 // pred_check
          %p491 = pneg %p50
        $region70: #{_lambda_.1} parent=67 // pred_check_branch
          %493 = sbr.rel (%p491) target = $region72
        $region71: #{_lambda_.1} parent=67 // pred_region
          %s494 = sand.u32 %s40, 1
          %s495 = scalar_lea.sflag [#allocation11], %s494
          %s496 = sand.u32 %s40, 1
          %s497 = smul.addr %s496, 8
          %s498 = scalar_lea.vmem [#allocation10], %s497
          %s500 = ssub.s32 128, 128
          %501 = vsyncadd %s495, %s500
          %s502 = smul.addr %s30, 128
          %s503 = scalar_lea.hbm %s0, %s502
          %s505 = sshll.u32 %s498, 4
          %s506 = int_to_ptr.vmem [resolvable:$true] %s505
          %508 = dma.hbm_to_vmem [thread:$0]  %s503, 128, %s506, %s495
        $region72: #{_lambda_.1} parent=67 // pred_fallthru
          _
      $region68: #{_lambda_.1} parent=5 // pred_fallthru
        _
      %p509 = scmp.le.s32.totalorder 1, %s30
      %p510 = scmp.lt.s32.totalorder %s30, 3
      %p511 = pnand %p509, %p510
      %p512 = pneg %p511
      // Predicated region
      $region73: #{_lambda_.1} parent=5 // pred_check
        _
      $region74: #{_lambda_.1} parent=5 // pred_check_branch
        %514 = sbr.rel (%p511) target = $region76
      $region75: #{_lambda_.1} parent=5 // pred_region
        %s515 = ssub.s32 %s30, 1
        %s516 = sand.u32 %s43, 1
        %s517 = scalar_lea.sflag [#allocation11], %s516
        %s518 = sand.u32 %s43, 1
        %s519 = smul.addr %s518, 8
        %s520 = scalar_lea.vmem [#allocation10], %s519
        // Predicated region
        $region77: #{_lambda_.1} parent=75 // pred_check
          %p521 = pneg %p56
        $region78: #{_lambda_.1} parent=75 // pred_check_branch
          %523 = sbr.rel (%p521) target = $region80
        $region79: #{_lambda_.1} parent=75 // pred_region
          %524 = dma.done %s517, 128
        $region80: #{_lambda_.1} parent=75 // pred_fallthru
          _
        // Predicated region
        $region81: #{_lambda_.1} parent=75 // pred_check
          %p525 = pneg %p77
        $region82: #{_lambda_.1} parent=75 // pred_check_branch
          %527 = sbr.rel (%p525) target = $region84
        $region83: #{_lambda_.1} parent=75 // pred_region
          %528 = dma.done [#allocation14], 256
        $region84: #{_lambda_.1} parent=75 // pred_fallthru
          _
        // Predicated region
        $region85: #{_lambda_.1} parent=75 // pred_check
          %p529 = pneg %p98
        $region86: #{_lambda_.1} parent=75 // pred_check_branch
          %531 = sbr.rel (%p529) target = $region88
        $region87: #{_lambda_.1} parent=75 // pred_region
          %532 = dma.done [#allocation14], 256
        $region88: #{_lambda_.1} parent=75 // pred_fallthru
          _
        // Predicated region
        $region89: #{_lambda_.1} parent=75 // pred_check
          %p533 = pneg %p161
        $region90: #{_lambda_.1} parent=75 // pred_check_branch
          %535 = sbr.rel (%p533) target = $region92
        $region91: #{_lambda_.1} parent=75 // pred_region
          %536 = dma.done [#allocation17], 256
        $region92: #{_lambda_.1} parent=75 // pred_fallthru
          _
        // Predicated region
        $region93: #{_lambda_.1} parent=75 // pred_check
          %p537 = pneg %p182
        $region94: #{_lambda_.1} parent=75 // pred_check_branch
          %539 = sbr.rel (%p537) target = $region96
        $region95: #{_lambda_.1} parent=75 // pred_region
          %540 = dma.done [#allocation17], 256
        $region96: #{_lambda_.1} parent=75 // pred_fallthru
          _
        // Predicated region
        $region97: #{_lambda_.1} parent=75 // pred_check
          %p541 = pneg %p203
        $region98: #{_lambda_.1} parent=75 // pred_check_branch
          %543 = sbr.rel (%p541) target = $region100
        $region99: #{_lambda_.1} parent=75 // pred_region
          %544 = dma.done [#allocation20], 256
        $region100: #{_lambda_.1} parent=75 // pred_fallthru
          _
        // Predicated region
        $region101: #{_lambda_.1} parent=75 // pred_check
          %p545 = pneg %p224
        $region102: #{_lambda_.1} parent=75 // pred_check_branch
          %547 = sbr.rel (%p545) target = $region104
        $region103: #{_lambda_.1} parent=75 // pred_region
          %548 = dma.done [#allocation20], 16
        $region104: #{_lambda_.1} parent=75 // pred_fallthru
          _
        // Predicated region
        $region105: #{_lambda_.1} parent=75 // pred_check
          %p549 = pneg %p266
        $region106: #{_lambda_.1} parent=75 // pred_check_branch
          %551 = sbr.rel (%p549) target = $region108
        $region107: #{_lambda_.1} parent=75 // pred_region
          %552 = dma.done [#allocation23], 256
        $region108: #{_lambda_.1} parent=75 // pred_fallthru
          _
        // Predicated region
        $region109: #{_lambda_.1} parent=75 // pred_check
          %p553 = pneg %p308
        $region110: #{_lambda_.1} parent=75 // pred_check_branch
          %555 = sbr.rel (%p553) target = $region112
        $region111: #{_lambda_.1} parent=75 // pred_region
          %556 = dma.done [#allocation23], 256
        $region112: #{_lambda_.1} parent=75 // pred_fallthru
          _
        %s557 = sand.u32 %s43, 1
        %s558 = scalar_lea.sflag [#allocation11], %s557
        %s559 = sand.u32 %s43, 1
        %s560 = smul.addr %s559, 8
        %s561 = scalar_lea.vmem [#allocation10], %s560
        %p562 = pneg %p56
        %p563 = pneg %p53
        %p564 = pneg %p77
        %p565 = pneg %p74
        %p566 = pneg %p98
        %p567 = pneg %p95
        %p568 = pneg %p119
        %p569 = pneg %p116
        %p570 = pneg %p140
        %p571 = pneg %p137
        %p572 = pneg %p161
        %p573 = pneg %p158
        %p574 = pneg %p182
        %p575 = pneg %p179
        %p576 = pneg %p203
        %p577 = pneg %p200
        %p578 = pneg %p224
        %p579 = pneg %p221
        %p580 = pneg %p245
        %p581 = pneg %p242
        %p582 = pneg %p266
        %p583 = pneg %p263
        %p584 = pneg %p287
        %p585 = pneg %p284
        %p586 = pneg %p308
        %p587 = pneg %p305
        %p588 = pneg %p329
        %p589 = pneg %p326
        %p590 = pneg %p355
        %p591 = pneg %p352
        %s592 = sand.u32 %s342, 1
        %s593 = scalar_lea.sflag [#allocation12], %s592
        %s594 = sand.u32 %s342, 1
        %s595 = smul.addr %s594, 8
        %s596 = scalar_lea.vmem [#allocation25], %s595
        %v598 = vld [vmem:[%s520] sm:$0xff]
        %v599 = vpack.c.bf16 %v598, %v598
        %v600 = vld [vmem:[#allocation13] sm:$0xf]
        %v601 = vld [vmem:[#allocation13 + $0x4] sm:$0xf]
        %v602 = vld [vmem:[#allocation13 + $0x8] sm:$0xf]
        %v603 = vld [vmem:[#allocation13 + $0xc] sm:$0xf]
        %v608 = vunpack.c.l.b16 %v600
        %v609 = vunpack.c.l.b16 %v601
        %v610 = vunpack.c.l.b16 %v602
        %v611 = vunpack.c.l.b16 %v603
        %v612 = vpack.c.b16 %v609, %v608
        %v613 = vpack.c.b16 %v611, %v610
        %vm616 = vcmask 261120
        %v618 = vsel %vm616, %v599, 0
        %620 = vmatprep.subr.bf16.mxu0 0
        %621 = vmatpush1.bf16.msra.mxu0 0
        %622 = vmatprep.subr.bf16.mxu0 0
        %623 = vmatpush1.bf16.msra.mxu0 0
        %624 = vmatprep.subr.bf16.mxu0 0
        %625 = vmatpush1.bf16.msra.mxu0 0
        %626 = vmatprep.subr.bf16.mxu0 0
        %627 = vmatpush1.bf16.msra.mxu0 0
        %628 = vmatprep.subr.bf16.mxu0 0
        %629 = vmatpush1.bf16.msra.mxu0 0
        %630 = vmatprep.subr.bf16.mxu0 0
        %631 = vmatpush1.bf16.msra.mxu0 0
        %632 = vmatprep.subr.bf16.mxu0 0
        %633 = vmatpush1.bf16.msra.mxu0 %v613
        %634 = vmatprep.subr.bf16.mxu0 0
        %635 = vmatpush1.bf16.msra.mxu0 %v612
        %636 = vmatprep.subr.bf16.mxu0 0
        %637 = vmatpush2.bf16.msra.mxu0 0
        %638 = vmatprep.subr.bf16.mxu0 0
        %639 = vmatpush2.bf16.msra.mxu0 0
        %640 = vmatprep.subr.bf16.mxu0 0
        %641 = vmatpush2.bf16.msra.mxu0 0
        %642 = vmatprep.subr.bf16.mxu0 0
        %643 = vmatpush2.bf16.msra.mxu0 0
        %644 = vmatprep.subr.bf16.mxu0 0
        %645 = vmatpush2.bf16.msra.mxu0 0
        %646 = vmatprep.subr.bf16.mxu0 0
        %647 = vmatpush2.bf16.msra.mxu0 0
        %648 = vmatprep.subr.bf16.mxu0 0
        %649 = vmatpush2.bf16.msra.mxu0 0
        %650 = vmatprep.subr.bf16.mxu0 0
        %651 = vmatpush2.bf16.msra.mxu0 0
        %652 = vmatprep.mubr.bf16.mxu0 0
        %653 = vmatmul.mubr.bf16.gmra.mxu0 %v618
        %v654 = vpop.f32.mrf.mxu0
        %v655 = vadd.f32 0.0, %v654
        %v656 = vpop.f32.mrf.mxu0
        %v657 = vpop.f32.mrf.mxu0
        %v658 = vpop.f32.mrf.mxu0
        %659 = vdwg.mxu0
        %v660 = vld [vmem:[#allocation15] sm:$0xf]
        %v661 = vld [vmem:[#allocation15 + $0x4] sm:$0xf]
        %v662 = vld [vmem:[#allocation15 + $0x8] sm:$0xf]
        %v663 = vld [vmem:[#allocation15 + $0xc] sm:$0xf]
        %v668 = vunpack.c.l.b16 %v660
        %v669 = vunpack.c.l.b16 %v661
        %v670 = vunpack.c.l.b16 %v662
        %v671 = vunpack.c.l.b16 %v663
        %v672 = vpack.c.b16 %v669, %v668
        %v673 = vpack.c.b16 %v671, %v670
        %676 = vmatprep.subr.bf16.mxu0 0
        %677 = vmatpush1.bf16.msra.mxu0 0
        %678 = vmatprep.subr.bf16.mxu0 0
        %679 = vmatpush1.bf16.msra.mxu0 0
        %680 = vmatprep.subr.bf16.mxu0 0
        %681 = vmatpush1.bf16.msra.mxu0 0
        %682 = vmatprep.subr.bf16.mxu0 0
        %683 = vmatpush1.bf16.msra.mxu0 0
        %684 = vmatprep.subr.bf16.mxu0 0
        %685 = vmatpush1.bf16.msra.mxu0 0
        %686 = vmatprep.subr.bf16.mxu0 0
        %687 = vmatpush1.bf16.msra.mxu0 0
        %688 = vmatprep.subr.bf16.mxu0 0
        %689 = vmatpush1.bf16.msra.mxu0 %v673
        %690 = vmatprep.subr.bf16.mxu0 0
        %691 = vmatpush1.bf16.msra.mxu0 %v672
        %692 = vmatprep.subr.bf16.mxu0 0
        %693 = vmatpush2.bf16.msra.mxu0 0
        %694 = vmatprep.subr.bf16.mxu0 0
        %695 = vmatpush2.bf16.msra.mxu0 0
        %696 = vmatprep.subr.bf16.mxu0 0
        %697 = vmatpush2.bf16.msra.mxu0 0
        %698 = vmatprep.subr.bf16.mxu0 0
        %699 = vmatpush2.bf16.msra.mxu0 0
        %700 = vmatprep.subr.bf16.mxu0 0
        %701 = vmatpush2.bf16.msra.mxu0 0
        %702 = vmatprep.subr.bf16.mxu0 0
        %703 = vmatpush2.bf16.msra.mxu0 0
        %704 = vmatprep.subr.bf16.mxu0 0
        %705 = vmatpush2.bf16.msra.mxu0 0
        %706 = vmatprep.subr.bf16.mxu0 0
        %707 = vmatpush2.bf16.msra.mxu0 0
        %708 = vmatprep.mubr.bf16.mxu0 0
        %709 = vmatmul.mubr.bf16.gmra.mxu0 %v618
        %v710 = vpop.f32.mrf.mxu0
        %v711 = vadd.f32 0.0, %v710
        %v712 = vpop.f32.mrf.mxu0
        %v713 = vpop.f32.mrf.mxu0
        %v714 = vpop.f32.mrf.mxu0
        %715 = vdwg.mxu0
        %v716 = vlaneseq
        %v717 = vshrl.u32 %v716, 7
        %v718 = vrot.slane %v655, 7
        %vm719 = vcmp.ge.s32.totalorder %v717, 1
        %v720 = vsel %vm719, %v718, 0.0
        %v721 = vld [vmem:[%s3] sm:$0x1]
        %v722 = vlaneseq
        %v723 = vshrl.u32 %v722, 7
        %v724 = vsub.s32 0, %v723
        %v725 = vrot.slane %v721, %v724
        %v726 = vmul.f32 %v725, %v720
        %v727 = vadd.f32 %v726, 0.0
        %v728 = vld [vmem:[%s3 + $0x1] sm:$0x1]
        %v729 = vlaneseq
        %v730 = vshrl.u32 %v729, 7
        %v731 = vsub.s32 0, %v730
        %v732 = vrot.slane %v728, %v731
        %v733 = vmul.f32 %v732, %v655
        %v734 = vadd.f32 %v727, %v733
        %v735 = vrot.slane %v655, 1
        %vm736 = vcmp.lt.s32.totalorder %v717, 7
        %v737 = vsel %vm736, %v735, 0.0
        %v738 = vld [vmem:[%s3 + $0x2] sm:$0x1]
        %v739 = vlaneseq
        %v740 = vshrl.u32 %v739, 7
        %v741 = vsub.s32 0, %v740
        %v742 = vrot.slane %v738, %v741
        %v743 = vmul.f32 %v742, %v737
        %v744 = vadd.f32 %v734, %v743
        %v745 = vrot.slane %v655, 2
        %vm746 = vcmp.lt.s32.totalorder %v717, 6
        %v747 = vsel %vm746, %v745, 0.0
        %v748 = vld [vmem:[%s3 + $0x3] sm:$0x1]
        %v749 = vlaneseq
        %v750 = vshrl.u32 %v749, 7
        %v751 = vsub.s32 0, %v750
        %v752 = vrot.slane %v748, %v751
        %v753 = vmul.f32 %v752, %v747
        %v754 = vadd.f32 %v744, %v753
        %v755 = vsub.f32 0.0, %v754
        %v756 = vmul.f32 %v755, 1.442695
        %v757 = vpow.pop %v756
        %v758 = vadd.f32 %v757, 1.0
        %v759 = vrcp.pop %v758
        %v760 = vmul.f32 1.0, %v759
        %v761 = vmul.f32 %v754, %v760
        %v762 = vrot.slane %v711, 7
        %v763 = vsel %vm719, %v762, 0.0
        %v764 = vld [vmem:[%s4] sm:$0x1]
        %v765 = vlaneseq
        %v766 = vshrl.u32 %v765, 7
        %v767 = vsub.s32 0, %v766
        %v768 = vrot.slane %v764, %v767
        %v769 = vmul.f32 %v768, %v763
        %v770 = vadd.f32 %v769, 0.0
        %v771 = vld [vmem:[%s4 + $0x1] sm:$0x1]
        %v772 = vlaneseq
        %v773 = vshrl.u32 %v772, 7
        %v774 = vsub.s32 0, %v773
        %v775 = vrot.slane %v771, %v774
        %v776 = vmul.f32 %v775, %v711
        %v777 = vadd.f32 %v770, %v776
        %v778 = vrot.slane %v711, 1
        %v779 = vsel %vm736, %v778, 0.0
        %v780 = vld [vmem:[%s4 + $0x2] sm:$0x1]
        %v781 = vlaneseq
        %v782 = vshrl.u32 %v781, 7
        %v783 = vsub.s32 0, %v782
        %v784 = vrot.slane %v780, %v783
        %v785 = vmul.f32 %v784, %v779
        %v786 = vadd.f32 %v777, %v785
        %v787 = vrot.slane %v711, 2
        %v788 = vsel %vm746, %v787, 0.0
        %v789 = vld [vmem:[%s4 + $0x3] sm:$0x1]
        %v790 = vlaneseq
        %v791 = vshrl.u32 %v790, 7
        %v792 = vsub.s32 0, %v791
        %v793 = vrot.slane %v789, %v792
        %v794 = vmul.f32 %v793, %v788
        %v795 = vadd.f32 %v786, %v794
        %v796 = vsub.f32 0.0, %v795
        %v797 = vmul.f32 %v796, 1.442695
        %v798 = vpow.pop %v797
        %v799 = vadd.f32 %v798, 1.0
        %v800 = vrcp.pop %v799
        %v801 = vmul.f32 1.0, %v800
        %v802 = vmul.f32 %v795, %v801
        %v803 = vpack.c.bf16 %v761, %v761
        %v804 = vld [vmem:[#allocation16] sm:$0xf]
        %v805 = vld [vmem:[#allocation16 + $0x4] sm:$0xf]
        %v806 = vld [vmem:[#allocation16 + $0x8] sm:$0xf]
        %v807 = vld [vmem:[#allocation16 + $0xc] sm:$0xf]
        %v812 = vunpack.c.l.b16 %v804
        %v813 = vunpack.c.l.b16 %v805
        %v814 = vunpack.c.l.b16 %v806
        %v815 = vunpack.c.l.b16 %v807
        %v816 = vpack.c.b16 %v813, %v812
        %v817 = vpack.c.b16 %v815, %v814
        %v821 = vsel %vm616, %v803, 0
        %823 = vmatprep.subr.bf16.mxu0 0
        %824 = vmatpush1.bf16.msra.mxu0 0
        %825 = vmatprep.subr.bf16.mxu0 0
        %826 = vmatpush1.bf16.msra.mxu0 0
        %827 = vmatprep.subr.bf16.mxu0 0
        %828 = vmatpush1.bf16.msra.mxu0 0
        %829 = vmatprep.subr.bf16.mxu0 0
        %830 = vmatpush1.bf16.msra.mxu0 0
        %831 = vmatprep.subr.bf16.mxu0 0
        %832 = vmatpush1.bf16.msra.mxu0 0
        %833 = vmatprep.subr.bf16.mxu0 0
        %834 = vmatpush1.bf16.msra.mxu0 0
        %835 = vmatprep.subr.bf16.mxu0 0
        %836 = vmatpush1.bf16.msra.mxu0 %v817
        %837 = vmatprep.subr.bf16.mxu0 0
        %838 = vmatpush1.bf16.msra.mxu0 %v816
        %839 = vmatprep.subr.bf16.mxu0 0
        %840 = vmatpush2.bf16.msra.mxu0 0
        %841 = vmatprep.subr.bf16.mxu0 0
        %842 = vmatpush2.bf16.msra.mxu0 0
        %843 = vmatprep.subr.bf16.mxu0 0
        %844 = vmatpush2.bf16.msra.mxu0 0
        %845 = vmatprep.subr.bf16.mxu0 0
        %846 = vmatpush2.bf16.msra.mxu0 0
        %847 = vmatprep.subr.bf16.mxu0 0
        %848 = vmatpush2.bf16.msra.mxu0 0
        %849 = vmatprep.subr.bf16.mxu0 0
        %850 = vmatpush2.bf16.msra.mxu0 0
        %851 = vmatprep.subr.bf16.mxu0 0
        %852 = vmatpush2.bf16.msra.mxu0 0
        %853 = vmatprep.subr.bf16.mxu0 0
        %854 = vmatpush2.bf16.msra.mxu0 0
        %855 = vmatprep.mubr.bf16.mxu0 0
        %856 = vmatmul.mubr.bf16.gmra.mxu0 %v821
        %v857 = vpop.f32.mrf.mxu0
        %v858 = vadd.f32 0.0, %v857
        %v859 = vpop.f32.mrf.mxu0
        %v860 = vpop.f32.mrf.mxu0
        %v861 = vpop.f32.mrf.mxu0
        %862 = vdwg.mxu0
        %v863 = vld [vmem:[#allocation18] sm:$0xf]
        %v864 = vld [vmem:[#allocation18 + $0x4] sm:$0xf]
        %v865 = vld [vmem:[#allocation18 + $0x8] sm:$0xf]
        %v866 = vld [vmem:[#allocation18 + $0xc] sm:$0xf]
        %v871 = vunpack.c.l.b16 %v863
        %v872 = vunpack.c.l.b16 %v864
        %v873 = vunpack.c.l.b16 %v865
        %v874 = vunpack.c.l.b16 %v866
        %v875 = vpack.c.b16 %v872, %v871
        %v876 = vpack.c.b16 %v874, %v873
        %879 = vmatprep.subr.bf16.mxu0 0
        %880 = vmatpush1.bf16.msra.mxu0 0
        %881 = vmatprep.subr.bf16.mxu0 0
        %882 = vmatpush1.bf16.msra.mxu0 0
        %883 = vmatprep.subr.bf16.mxu0 0
        %884 = vmatpush1.bf16.msra.mxu0 0
        %885 = vmatprep.subr.bf16.mxu0 0
        %886 = vmatpush1.bf16.msra.mxu0 0
        %887 = vmatprep.subr.bf16.mxu0 0
        %888 = vmatpush1.bf16.msra.mxu0 0
        %889 = vmatprep.subr.bf16.mxu0 0
        %890 = vmatpush1.bf16.msra.mxu0 0
        %891 = vmatprep.subr.bf16.mxu0 0
        %892 = vmatpush1.bf16.msra.mxu0 %v876
        %893 = vmatprep.subr.bf16.mxu0 0
        %894 = vmatpush1.bf16.msra.mxu0 %v875
        %895 = vmatprep.subr.bf16.mxu0 0
        %896 = vmatpush2.bf16.msra.mxu0 0
        %897 = vmatprep.subr.bf16.mxu0 0
        %898 = vmatpush2.bf16.msra.mxu0 0
        %899 = vmatprep.subr.bf16.mxu0 0
        %900 = vmatpush2.bf16.msra.mxu0 0
        %901 = vmatprep.subr.bf16.mxu0 0
        %902 = vmatpush2.bf16.msra.mxu0 0
        %903 = vmatprep.subr.bf16.mxu0 0
        %904 = vmatpush2.bf16.msra.mxu0 0
        %905 = vmatprep.subr.bf16.mxu0 0
        %906 = vmatpush2.bf16.msra.mxu0 0
        %907 = vmatprep.subr.bf16.mxu0 0
        %908 = vmatpush2.bf16.msra.mxu0 0
        %909 = vmatprep.subr.bf16.mxu0 0
        %910 = vmatpush2.bf16.msra.mxu0 0
        %911 = vmatprep.mubr.bf16.mxu0 0
        %912 = vmatmul.mubr.bf16.gmra.mxu0 %v821
        %v913 = vpop.f32.mrf.mxu0
        %v914 = vadd.f32 0.0, %v913
        %v915 = vpop.f32.mrf.mxu0
        %v916 = vpop.f32.mrf.mxu0
        %v917 = vpop.f32.mrf.mxu0
        %918 = vdwg.mxu0
        %vm919 = vcmask 130048
        %920 = vst.msk [vmem:[#allocation4] sm:$0xff] %vm919, %v914
        %v921 = vld [vmem:[#allocation19] sm:$0xf]
        %v922 = vld [vmem:[#allocation19 + $0x4] sm:$0xf]
        %v923 = vld [vmem:[#allocation19 + $0x8] sm:$0xf]
        %v924 = vld [vmem:[#allocation19 + $0xc] sm:$0xf]
        %v929 = vunpack.c.l.b16 %v921
        %v930 = vunpack.c.l.b16 %v922
        %v931 = vunpack.c.l.b16 %v923
        %v932 = vunpack.c.l.b16 %v924
        %v933 = vpack.c.b16 %v930, %v929
        %v934 = vpack.c.b16 %v932, %v931
        %937 = vmatprep.subr.bf16.mxu0 0
        %938 = vmatpush1.bf16.msra.mxu0 0
        %939 = vmatprep.subr.bf16.mxu0 0
        %940 = vmatpush1.bf16.msra.mxu0 0
        %941 = vmatprep.subr.bf16.mxu0 0
        %942 = vmatpush1.bf16.msra.mxu0 0
        %943 = vmatprep.subr.bf16.mxu0 0
        %944 = vmatpush1.bf16.msra.mxu0 0
        %945 = vmatprep.subr.bf16.mxu0 0
        %946 = vmatpush1.bf16.msra.mxu0 0
        %947 = vmatprep.subr.bf16.mxu0 0
        %948 = vmatpush1.bf16.msra.mxu0 0
        %949 = vmatprep.subr.bf16.mxu0 0
        %950 = vmatpush1.bf16.msra.mxu0 %v934
        %951 = vmatprep.subr.bf16.mxu0 0
        %952 = vmatpush1.bf16.msra.mxu0 %v933
        %953 = vmatprep.subr.bf16.mxu0 0
        %954 = vmatpush2.bf16.msra.mxu0 0
        %955 = vmatprep.subr.bf16.mxu0 0
        %956 = vmatpush2.bf16.msra.mxu0 0
        %957 = vmatprep.subr.bf16.mxu0 0
        %958 = vmatpush2.bf16.msra.mxu0 0
        %959 = vmatprep.subr.bf16.mxu0 0
        %960 = vmatpush2.bf16.msra.mxu0 0
        %961 = vmatprep.subr.bf16.mxu0 0
        %962 = vmatpush2.bf16.msra.mxu0 0
        %963 = vmatprep.subr.bf16.mxu0 0
        %964 = vmatpush2.bf16.msra.mxu0 0
        %965 = vmatprep.subr.bf16.mxu0 0
        %966 = vmatpush2.bf16.msra.mxu0 0
        %967 = vmatprep.subr.bf16.mxu0 0
        %968 = vmatpush2.bf16.msra.mxu0 0
        %969 = vmatprep.mubr.bf16.mxu0 0
        %970 = vmatmul.mubr.bf16.gmra.mxu0 %v821
        %v971 = vpop.f32.mrf.mxu0
        %v972 = vadd.f32 0.0, %v971
        %v973 = vpop.f32.mrf.mxu0
        %v974 = vpop.f32.mrf.mxu0
        %v975 = vpop.f32.mrf.mxu0
        %976 = vdwg.mxu0
        %977 = vst.msk [vmem:[#allocation5] sm:$0xff] %vm919, %v972
        %v978 = vpack.c.bf16 %v858, %v858
        %v979 = vld [vmem:[#allocation21] sm:$0x1]
        %v980 = vld [vmem:[%s9] sm:$0x1]
        %v981 = vmul.f32 %v980, 2.0
        %v983 = vlaneseq
        %v984 = vshrl.u32 %v983, 7
        %v985 = vsub.s32 0, %v984
        %v986 = vrot.slane %v981, %v985
        %vm988 = vcmask 15360
        %v990 = vsel %vm988, %v978, 0
        %vm992 = vcmask 1040384
        %v994 = vsel %vm992, %v979, 0
        %996 = vmatprep.subr.bf16.mxu0 0
        %997 = vmatpush1.bf16.msra.mxu0 0
        %998 = vmatprep.subr.bf16.mxu0 0
        %999 = vmatpush1.bf16.msra.mxu0 0
        %1000 = vmatprep.subr.bf16.mxu0 0
        %1001 = vmatpush1.bf16.msra.mxu0 0
        %1002 = vmatprep.subr.bf16.mxu0 0
        %1003 = vmatpush1.bf16.msra.mxu0 0
        %1004 = vmatprep.subr.bf16.mxu0 0
        %1005 = vmatpush1.bf16.msra.mxu0 0
        %1006 = vmatprep.subr.bf16.mxu0 0
        %1007 = vmatpush1.bf16.msra.mxu0 0
        %1008 = vmatprep.subr.bf16.mxu0 0
        %1009 = vmatpush1.bf16.msra.mxu0 0
        %1010 = vmatprep.subr.bf16.mxu0 0
        %1011 = vmatpush1.bf16.msra.mxu0 %v994
        %1012 = vmatprep.subr.bf16.mxu0 0
        %1013 = vmatpush2.bf16.msra.mxu0 0
        %1014 = vmatprep.subr.bf16.mxu0 0
        %1015 = vmatpush2.bf16.msra.mxu0 0
        %1016 = vmatprep.subr.bf16.mxu0 0
        %1017 = vmatpush2.bf16.msra.mxu0 0
        %1018 = vmatprep.subr.bf16.mxu0 0
        %1019 = vmatpush2.bf16.msra.mxu0 0
        %1020 = vmatprep.subr.bf16.mxu0 0
        %1021 = vmatpush2.bf16.msra.mxu0 0
        %1022 = vmatprep.subr.bf16.mxu0 0
        %1023 = vmatpush2.bf16.msra.mxu0 0
        %1024 = vmatprep.subr.bf16.mxu0 0
        %1025 = vmatpush2.bf16.msra.mxu0 0
        %1026 = vmatprep.subr.bf16.mxu0 0
        %1027 = vmatpush2.bf16.msra.mxu0 0
        %1028 = vmatprep.mubr.bf16.mxu0 0
        %1029 = vmatmul.mubr.bf16.gmra.mxu0 %v990
        %v1030 = vpop.f32.mrf.mxu0
        %v1031 = vadd.f32 %v986, %v1030
        %v1032 = vpop.f32.mrf.mxu0
        %v1033 = vpop.f32.mrf.mxu0
        %v1034 = vpop.f32.mrf.mxu0
        %1035 = vdwg.mxu0
        %vm1036 = vcmp.gt.f32.partialorder %v1031, 20.0
        %v1037 = vmin.f32 %v1031, 20.0
        %v1038 = vmul.f32 %v1037, 1.442695
        %v1039 = vpow.pop %v1038
        %v1040 = vadd.f32 %v1039, 1.0
        %v1041 = vlog2.pop %v1040
        %v1042 = vmul.f32 %v1041, 0.6931472
        %v1043 = vsel %vm1036, %v1031, %v1042
        %1044 = vst.msk [vmem:[#allocation2] sm:$0xff] %vm616, %v1043
        %v1045 = vmul.f32 %v1043, %v761
        %1046 = vst.msk [vmem:[#allocation3] sm:$0xff] %vm616, %v1045
        %v1047 = vld [vmem:[#allocation22] sm:$0xff]
        %v1048 = vld [vmem:[#allocation22 + $0x8] sm:$0xff]
        %v1049 = vmul.f32 %v1047, 1.442695
        %v1050 = vpow.pop %v1049
        %v1051 = vmul.f32 %v1048, 1.442695
        %v1052 = vpow.pop %v1051
        %v1053 = vsub.f32 0.0, %v1050
        %v1054 = vsub.f32 0.0, %v1052
        %v1055 = vld [vmem:[#allocation2] sm:$0xff]
        %v1056 = vld [vmem:[#allocation3] sm:$0xff]
        %v1057 = vld [vmem:[#allocation4] sm:$0xff]
        %v1058 = vld [vmem:[#allocation5] sm:$0xff]
        %v1060 = vcombine.high %v1055, %v1055
        %v1062 = vunpack.c.l.s4 1966171168
        %v1063 = vunpack.c.0.s8 %v1062
        %v1064 = vlaneseq
        %v1065 = vshrl.u32 %v1064, 7
        %v1066 = vsub.s32 %v1063, %v1065
        %v1067 = vrot.slane %v1055, %v1066
        %v1069 = vunpack.c.l.s4 1966171168
        %v1070 = vunpack.c.0.s8 %v1069
        %v1071 = vlaneseq
        %v1072 = vshrl.u32 %v1071, 7
        %v1073 = vsub.s32 %v1070, %v1072
        %v1074 = vrot.slane %v1060, %v1073
        %v1075 = vcombine.high %v1067, %v1067
        %v1076 = vcombine.high %v1074, %v1074
        %v1078 = vunpack.c.l.s4 1966171168
        %v1079 = vunpack.c.0.s8 %v1078
        %v1080 = vlaneseq
        %v1081 = vshrl.u32 %v1080, 7
        %v1082 = vsub.s32 %v1079, %v1081
        %v1083 = vrot.slane %v1067, %v1082
        %v1085 = vunpack.c.l.s4 1966171168
        %v1086 = vunpack.c.0.s8 %v1085
        %v1087 = vlaneseq
        %v1088 = vshrl.u32 %v1087, 7
        %v1089 = vsub.s32 %v1086, %v1088
        %v1090 = vrot.slane %v1074, %v1089
        %v1092 = vunpack.c.l.s4 1966171168
        %v1093 = vunpack.c.0.s8 %v1092
        %v1094 = vlaneseq
        %v1095 = vshrl.u32 %v1094, 7
        %v1096 = vsub.s32 %v1093, %v1095
        %v1097 = vrot.slane %v1075, %v1096
        %v1099 = vunpack.c.l.s4 1966171168
        %v1100 = vunpack.c.0.s8 %v1099
        %v1101 = vlaneseq
        %v1102 = vshrl.u32 %v1101, 7
        %v1103 = vsub.s32 %v1100, %v1102
        %v1104 = vrot.slane %v1076, %v1103
        %v1105 = vcombine.high %v1083, %v1083
        %v1106 = vcombine.high %v1090, %v1090
        %v1107 = vcombine.high %v1097, %v1097
        %v1108 = vcombine.high %v1104, %v1104
        %v1109 = vlaneseq
        %v1110 = vshrl.u32 %v1109, 7
        %v1111 = vsub.s32 0, %v1110
        %v1112 = vrot.slane %v1083, %v1111
        %v1113 = vlaneseq
        %v1114 = vshrl.u32 %v1113, 7
        %v1115 = vsub.s32 0, %v1114
        %v1116 = vrot.slane %v1097, %v1115
        %v1117 = vlaneseq
        %v1118 = vshrl.u32 %v1117, 7
        %v1119 = vsub.s32 0, %v1118
        %v1120 = vrot.slane %v1105, %v1119
        %v1121 = vlaneseq
        %v1122 = vshrl.u32 %v1121, 7
        %v1123 = vsub.s32 0, %v1122
        %v1124 = vrot.slane %v1107, %v1123
        %v1125 = vlaneseq
        %v1126 = vshrl.u32 %v1125, 7
        %v1127 = vsub.s32 0, %v1126
        %v1128 = vrot.slane %v1090, %v1127
        %v1129 = vlaneseq
        %v1130 = vshrl.u32 %v1129, 7
        %v1131 = vsub.s32 0, %v1130
        %v1132 = vrot.slane %v1104, %v1131
        %v1133 = vlaneseq
        %v1134 = vshrl.u32 %v1133, 7
        %v1135 = vsub.s32 0, %v1134
        %v1136 = vrot.slane %v1106, %v1135
        %v1137 = vlaneseq
        %v1138 = vshrl.u32 %v1137, 7
        %v1139 = vsub.s32 0, %v1138
        %v1140 = vrot.slane %v1108, %v1139
        %v1149 = vmul.f32 %v1112, %v1053
        %v1150 = vmul.f32 %v1112, %v1054
        %v1151 = vmul.f32 %v1116, %v1053
        %v1152 = vmul.f32 %v1116, %v1054
        %v1153 = vmul.f32 %v1120, %v1053
        %v1154 = vmul.f32 %v1120, %v1054
        %v1155 = vmul.f32 %v1124, %v1053
        %v1156 = vmul.f32 %v1124, %v1054
        %v1157 = vmul.f32 %v1128, %v1053
        %v1158 = vmul.f32 %v1128, %v1054
        %v1159 = vmul.f32 %v1132, %v1053
        %v1160 = vmul.f32 %v1132, %v1054
        %v1161 = vmul.f32 %v1136, %v1053
        %v1162 = vmul.f32 %v1136, %v1054
        %v1163 = vmul.f32 %v1140, %v1053
        %v1164 = vmul.f32 %v1140, %v1054
        %v1165 = vmul.f32 %v1149, 1.442695
        %v1166 = vpow.pop %v1165
        %v1167 = vmul.f32 %v1150, 1.442695
        %v1168 = vpow.pop %v1167
        %v1169 = vmul.f32 %v1151, 1.442695
        %v1170 = vpow.pop %v1169
        %v1171 = vmul.f32 %v1152, 1.442695
        %v1172 = vpow.pop %v1171
        %v1173 = vmul.f32 %v1153, 1.442695
        %v1174 = vpow.pop %v1173
        %v1175 = vmul.f32 %v1154, 1.442695
        %v1176 = vpow.pop %v1175
        %v1177 = vmul.f32 %v1155, 1.442695
        %v1178 = vpow.pop %v1177
        %v1179 = vmul.f32 %v1156, 1.442695
        %v1180 = vpow.pop %v1179
        %v1181 = vmul.f32 %v1157, 1.442695
        %v1182 = vpow.pop %v1181
        %v1183 = vmul.f32 %v1158, 1.442695
        %v1184 = vpow.pop %v1183
        %v1185 = vmul.f32 %v1159, 1.442695
        %v1186 = vpow.pop %v1185
        %v1187 = vmul.f32 %v1160, 1.442695
        %v1188 = vpow.pop %v1187
        %v1189 = vmul.f32 %v1161, 1.442695
        %v1190 = vpow.pop %v1189
        %v1191 = vmul.f32 %v1162, 1.442695
        %v1192 = vpow.pop %v1191
        %v1193 = vmul.f32 %v1163, 1.442695
        %v1194 = vpow.pop %v1193
        %v1195 = vmul.f32 %v1164, 1.442695
        %v1196 = vpow.pop %v1195
        %1197 = vst.msk [vmem:[#allocation7] sm:$0xff] %vm616, %v1166
        %1198 = vst.msk [vmem:[#allocation7 + $0x8] sm:$0xff] %vm616, %v1168
        %1199 = vst.msk [vmem:[#allocation7 + $0x10] sm:$0xff] %vm616, %v1170
        %1200 = vst.msk [vmem:[#allocation7 + $0x18] sm:$0xff] %vm616, %v1172
        %1201 = vst.msk [vmem:[#allocation7 + $0x20] sm:$0xff] %vm616, %v1174
        %1202 = vst.msk [vmem:[#allocation7 + $0x28] sm:$0xff] %vm616, %v1176
        %1203 = vst.msk [vmem:[#allocation7 + $0x30] sm:$0xff] %vm616, %v1178
        %1204 = vst.msk [vmem:[#allocation7 + $0x38] sm:$0xff] %vm616, %v1180
        %1205 = vst.msk [vmem:[#allocation7 + $0x40] sm:$0xff] %vm616, %v1182
        %1206 = vst.msk [vmem:[#allocation7 + $0x48] sm:$0xff] %vm616, %v1184
        %1207 = vst.msk [vmem:[#allocation7 + $0x50] sm:$0xff] %vm616, %v1186
        %1208 = vst.msk [vmem:[#allocation7 + $0x58] sm:$0xff] %vm616, %v1188
        %1209 = vst.msk [vmem:[#allocation7 + $0x60] sm:$0xff] %vm616, %v1190
        %1210 = vst.msk [vmem:[#allocation7 + $0x68] sm:$0xff] %vm616, %v1192
        %1211 = vst.msk [vmem:[#allocation7 + $0x70] sm:$0xff] %vm616, %v1194
        %1212 = vst.msk [vmem:[#allocation7 + $0x78] sm:$0xff] %vm616, %v1196
        %v1213 = vlaneseq
        %v1214 = vshrl.u32 %v1213, 7
        %v1215 = vsub.s32 0, %v1214
        %v1216 = vrot.slane %v1057, %v1215
        %1218 = vbcast.lane.b32.xlu0 %v1216, 256
        %v1219 = vpop.permute.xlu0 %1218
        %s1221 = sor.u32 256, 8
        %1222 = vbcast.lane.b32.xlu0 %v1216, %s1221
        %v1223 = vpop.permute.xlu0 %1222
        %v1224 = vlaneseq
        %v1225 = vshrl.u32 %v1224, 7
        %v1226 = vsub.s32 1, %v1225
        %v1227 = vrot.slane %v1057, %v1226
        %1229 = vbcast.lane.b32.xlu0 %v1227, 256
        %v1230 = vpop.permute.xlu0 %1229
        %s1232 = sor.u32 256, 8
        %1233 = vbcast.lane.b32.xlu0 %v1227, %s1232
        %v1234 = vpop.permute.xlu0 %1233
        %v1235 = vlaneseq
        %v1236 = vshrl.u32 %v1235, 7
        %v1237 = vsub.s32 2, %v1236
        %v1238 = vrot.slane %v1057, %v1237
        %1240 = vbcast.lane.b32.xlu0 %v1238, 256
        %v1241 = vpop.permute.xlu0 %1240
        %s1243 = sor.u32 256, 8
        %1244 = vbcast.lane.b32.xlu0 %v1238, %s1243
        %v1245 = vpop.permute.xlu0 %1244
        %v1246 = vlaneseq
        %v1247 = vshrl.u32 %v1246, 7
        %v1248 = vsub.s32 3, %v1247
        %v1249 = vrot.slane %v1057, %v1248
        %1251 = vbcast.lane.b32.xlu0 %v1249, 256
        %v1252 = vpop.permute.xlu0 %1251
        %s1254 = sor.u32 256, 8
        %1255 = vbcast.lane.b32.xlu0 %v1249, %s1254
        %v1256 = vpop.permute.xlu0 %1255
        %v1257 = vlaneseq
        %v1258 = vshrl.u32 %v1257, 7
        %v1259 = vsub.s32 4, %v1258
        %v1260 = vrot.slane %v1057, %v1259
        %1262 = vbcast.lane.b32.xlu0 %v1260, 256
        %v1263 = vpop.permute.xlu0 %1262
        %s1265 = sor.u32 256, 8
        %1266 = vbcast.lane.b32.xlu0 %v1260, %s1265
        %v1267 = vpop.permute.xlu0 %1266
        %v1268 = vlaneseq
        %v1269 = vshrl.u32 %v1268, 7
        %v1270 = vsub.s32 5, %v1269
        %v1271 = vrot.slane %v1057, %v1270
        %1273 = vbcast.lane.b32.xlu0 %v1271, 256
        %v1274 = vpop.permute.xlu0 %1273
        %s1276 = sor.u32 256, 8
        %1277 = vbcast.lane.b32.xlu0 %v1271, %s1276
        %v1278 = vpop.permute.xlu0 %1277
        %v1279 = vlaneseq
        %v1280 = vshrl.u32 %v1279, 7
        %v1281 = vsub.s32 6, %v1280
        %v1282 = vrot.slane %v1057, %v1281
        %1284 = vbcast.lane.b32.xlu0 %v1282, 256
        %v1285 = vpop.permute.xlu0 %1284
        %s1287 = sor.u32 256, 8
        %1288 = vbcast.lane.b32.xlu0 %v1282, %s1287
        %v1289 = vpop.permute.xlu0 %1288
        %v1290 = vlaneseq
        %v1291 = vshrl.u32 %v1290, 7
        %v1292 = vsub.s32 7, %v1291
        %v1293 = vrot.slane %v1057, %v1292
        %1295 = vbcast.lane.b32.xlu0 %v1293, 256
        %v1296 = vpop.permute.xlu0 %1295
        %s1298 = sor.u32 256, 8
        %1299 = vbcast.lane.b32.xlu0 %v1293, %s1298
        %v1300 = vpop.permute.xlu0 %1299
        %v1302 = vcombine.high %v1056, %v1056
        %v1304 = vunpack.c.l.s4 1966171168
        %v1305 = vunpack.c.0.s8 %v1304
        %v1306 = vlaneseq
        %v1307 = vshrl.u32 %v1306, 7
        %v1308 = vsub.s32 %v1305, %v1307
        %v1309 = vrot.slane %v1056, %v1308
        %v1311 = vunpack.c.l.s4 1966171168
        %v1312 = vunpack.c.0.s8 %v1311
        %v1313 = vlaneseq
        %v1314 = vshrl.u32 %v1313, 7
        %v1315 = vsub.s32 %v1312, %v1314
        %v1316 = vrot.slane %v1302, %v1315
        %v1317 = vcombine.high %v1309, %v1309
        %v1318 = vcombine.high %v1316, %v1316
        %v1320 = vunpack.c.l.s4 1966171168
        %v1321 = vunpack.c.0.s8 %v1320
        %v1322 = vlaneseq
        %v1323 = vshrl.u32 %v1322, 7
        %v1324 = vsub.s32 %v1321, %v1323
        %v1325 = vrot.slane %v1309, %v1324
        %v1327 = vunpack.c.l.s4 1966171168
        %v1328 = vunpack.c.0.s8 %v1327
        %v1329 = vlaneseq
        %v1330 = vshrl.u32 %v1329, 7
        %v1331 = vsub.s32 %v1328, %v1330
        %v1332 = vrot.slane %v1316, %v1331
        %v1334 = vunpack.c.l.s4 1966171168
        %v1335 = vunpack.c.0.s8 %v1334
        %v1336 = vlaneseq
        %v1337 = vshrl.u32 %v1336, 7
        %v1338 = vsub.s32 %v1335, %v1337
        %v1339 = vrot.slane %v1317, %v1338
        %v1341 = vunpack.c.l.s4 1966171168
        %v1342 = vunpack.c.0.s8 %v1341
        %v1343 = vlaneseq
        %v1344 = vshrl.u32 %v1343, 7
        %v1345 = vsub.s32 %v1342, %v1344
        %v1346 = vrot.slane %v1318, %v1345
        %v1347 = vcombine.high %v1325, %v1325
        %v1348 = vcombine.high %v1332, %v1332
        %v1349 = vcombine.high %v1339, %v1339
        %v1350 = vcombine.high %v1346, %v1346
        %v1351 = vlaneseq
        %v1352 = vshrl.u32 %v1351, 7
        %v1353 = vsub.s32 0, %v1352
        %v1354 = vrot.slane %v1325, %v1353
        %v1355 = vlaneseq
        %v1356 = vshrl.u32 %v1355, 7
        %v1357 = vsub.s32 0, %v1356
        %v1358 = vrot.slane %v1339, %v1357
        %v1359 = vlaneseq
        %v1360 = vshrl.u32 %v1359, 7
        %v1361 = vsub.s32 0, %v1360
        %v1362 = vrot.slane %v1347, %v1361
        %v1363 = vlaneseq
        %v1364 = vshrl.u32 %v1363, 7
        %v1365 = vsub.s32 0, %v1364
        %v1366 = vrot.slane %v1349, %v1365
        %v1367 = vlaneseq
        %v1368 = vshrl.u32 %v1367, 7
        %v1369 = vsub.s32 0, %v1368
        %v1370 = vrot.slane %v1332, %v1369
        %v1371 = vlaneseq
        %v1372 = vshrl.u32 %v1371, 7
        %v1373 = vsub.s32 0, %v1372
        %v1374 = vrot.slane %v1346, %v1373
        %v1375 = vlaneseq
        %v1376 = vshrl.u32 %v1375, 7
        %v1377 = vsub.s32 0, %v1376
        %v1378 = vrot.slane %v1348, %v1377
        %v1379 = vlaneseq
        %v1380 = vshrl.u32 %v1379, 7
        %v1381 = vsub.s32 0, %v1380
        %v1382 = vrot.slane %v1350, %v1381
        %v1391 = vmul.f32 %v1219, %v1354
        %v1392 = vmul.f32 %v1223, %v1354
        %v1393 = vmul.f32 %v1230, %v1358
        %v1394 = vmul.f32 %v1234, %v1358
        %v1395 = vmul.f32 %v1241, %v1362
        %v1396 = vmul.f32 %v1245, %v1362
        %v1397 = vmul.f32 %v1252, %v1366
        %v1398 = vmul.f32 %v1256, %v1366
        %v1399 = vmul.f32 %v1263, %v1370
        %v1400 = vmul.f32 %v1267, %v1370
        %v1401 = vmul.f32 %v1274, %v1374
        %v1402 = vmul.f32 %v1278, %v1374
        %v1403 = vmul.f32 %v1285, %v1378
        %v1404 = vmul.f32 %v1289, %v1378
        %v1405 = vmul.f32 %v1296, %v1382
        %v1406 = vmul.f32 %v1300, %v1382
        %1407 = vst.msk [vmem:[#allocation8] sm:$0xff] %vm616, %v1391
        %1408 = vst.msk [vmem:[#allocation8 + $0x8] sm:$0xff] %vm616, %v1392
        %1409 = vst.msk [vmem:[#allocation8 + $0x10] sm:$0xff] %vm616, %v1393
        %1410 = vst.msk [vmem:[#allocation8 + $0x18] sm:$0xff] %vm616, %v1394
        %1411 = vst.msk [vmem:[#allocation8 + $0x20] sm:$0xff] %vm616, %v1395
        %1412 = vst.msk [vmem:[#allocation8 + $0x28] sm:$0xff] %vm616, %v1396
        %1413 = vst.msk [vmem:[#allocation8 + $0x30] sm:$0xff] %vm616, %v1397
        %1414 = vst.msk [vmem:[#allocation8 + $0x38] sm:$0xff] %vm616, %v1398
        %1415 = vst.msk [vmem:[#allocation8 + $0x40] sm:$0xff] %vm616, %v1399
        %1416 = vst.msk [vmem:[#allocation8 + $0x48] sm:$0xff] %vm616, %v1400
        %1417 = vst.msk [vmem:[#allocation8 + $0x50] sm:$0xff] %vm616, %v1401
        %1418 = vst.msk [vmem:[#allocation8 + $0x58] sm:$0xff] %vm616, %v1402
        %1419 = vst.msk [vmem:[#allocation8 + $0x60] sm:$0xff] %vm616, %v1403
        %1420 = vst.msk [vmem:[#allocation8 + $0x68] sm:$0xff] %vm616, %v1404
        %1421 = vst.msk [vmem:[#allocation8 + $0x70] sm:$0xff] %vm616, %v1405
        %1422 = vst.msk [vmem:[#allocation8 + $0x78] sm:$0xff] %vm616, %v1406
        %v1423 = vld [vmem:[#allocation7] sm:$0xff]
        %v1424 = vld [vmem:[#allocation7 + $0x8] sm:$0xff]
        %v1425 = vmul.f32 %v1423, 0.0
        %v1426 = vmul.f32 %v1424, 0.0
        %v1427 = vld [vmem:[#allocation8] sm:$0xff]
        %v1428 = vld [vmem:[#allocation8 + $0x8] sm:$0xff]
        %v1429 = vadd.f32 %v1425, %v1427
        %v1430 = vadd.f32 %v1426, %v1428
        %1431 = vst.msk [vmem:[#allocation9] sm:$0xff] %vm616, %v1429
        %1432 = vst.msk [vmem:[#allocation9 + $0x8] sm:$0xff] %vm616, %v1430
        %s1433 = scalar_lea.vmem [#allocation7], 16
        %v1434 = vld [vmem:[%s1433] sm:$0xff]
        %v1435 = vld [vmem:[%s1433 + $0x8] sm:$0xff]
        %v1436 = vmul.f32 %v1434, %v1429
        %v1437 = vmul.f32 %v1435, %v1430
        %s1438 = scalar_lea.vmem [#allocation8], 16
        %v1439 = vld [vmem:[%s1438] sm:$0xff]
        %v1440 = vld [vmem:[%s1438 + $0x8] sm:$0xff]
        %v1441 = vadd.f32 %v1436, %v1439
        %v1442 = vadd.f32 %v1437, %v1440
        %s1443 = scalar_lea.vmem [#allocation9], 16
        %1444 = vst.msk [vmem:[%s1443] sm:$0xff] %vm616, %v1441
        %1445 = vst.msk [vmem:[%s1443 + $0x8] sm:$0xff] %vm616, %v1442
        %s1446 = scalar_lea.vmem [#allocation7], 32
        %v1447 = vld [vmem:[%s1446] sm:$0xff]
        %v1448 = vld [vmem:[%s1446 + $0x8] sm:$0xff]
        %v1449 = vmul.f32 %v1447, %v1441
        %v1450 = vmul.f32 %v1448, %v1442
        %s1451 = scalar_lea.vmem [#allocation8], 32
        %v1452 = vld [vmem:[%s1451] sm:$0xff]
        %v1453 = vld [vmem:[%s1451 + $0x8] sm:$0xff]
        %v1454 = vadd.f32 %v1449, %v1452
        %v1455 = vadd.f32 %v1450, %v1453
        %s1456 = scalar_lea.vmem [#allocation9], 32
        %1457 = vst.msk [vmem:[%s1456] sm:$0xff] %vm616, %v1454
        %1458 = vst.msk [vmem:[%s1456 + $0x8] sm:$0xff] %vm616, %v1455
        %s1459 = scalar_lea.vmem [#allocation7], 48
        %v1460 = vld [vmem:[%s1459] sm:$0xff]
        %v1461 = vld [vmem:[%s1459 + $0x8] sm:$0xff]
        %v1462 = vmul.f32 %v1460, %v1454
        %v1463 = vmul.f32 %v1461, %v1455
        %s1464 = scalar_lea.vmem [#allocation8], 48
        %v1465 = vld [vmem:[%s1464] sm:$0xff]
        %v1466 = vld [vmem:[%s1464 + $0x8] sm:$0xff]
        %v1467 = vadd.f32 %v1462, %v1465
        %v1468 = vadd.f32 %v1463, %v1466
        %s1469 = scalar_lea.vmem [#allocation9], 48
        %1470 = vst.msk [vmem:[%s1469] sm:$0xff] %vm616, %v1467
        %1471 = vst.msk [vmem:[%s1469 + $0x8] sm:$0xff] %vm616, %v1468
        %s1472 = scalar_lea.vmem [#allocation7], 64
        %v1473 = vld [vmem:[%s1472] sm:$0xff]
        %v1474 = vld [vmem:[%s1472 + $0x8] sm:$0xff]
        %v1475 = vmul.f32 %v1473, %v1467
        %v1476 = vmul.f32 %v1474, %v1468
        %s1477 = scalar_lea.vmem [#allocation8], 64
        %v1478 = vld [vmem:[%s1477] sm:$0xff]
        %v1479 = vld [vmem:[%s1477 + $0x8] sm:$0xff]
        %v1480 = vadd.f32 %v1475, %v1478
        %v1481 = vadd.f32 %v1476, %v1479
        %s1482 = scalar_lea.vmem [#allocation9], 64
        %1483 = vst.msk [vmem:[%s1482] sm:$0xff] %vm616, %v1480
        %1484 = vst.msk [vmem:[%s1482 + $0x8] sm:$0xff] %vm616, %v1481
        %s1485 = scalar_lea.vmem [#allocation7], 80
        %v1486 = vld [vmem:[%s1485] sm:$0xff]
        %v1487 = vld [vmem:[%s1485 + $0x8] sm:$0xff]
        %v1488 = vmul.f32 %v1486, %v1480
        %v1489 = vmul.f32 %v1487, %v1481
        %s1490 = scalar_lea.vmem [#allocation8], 80
        %v1491 = vld [vmem:[%s1490] sm:$0xff]
        %v1492 = vld [vmem:[%s1490 + $0x8] sm:$0xff]
        %v1493 = vadd.f32 %v1488, %v1491
        %v1494 = vadd.f32 %v1489, %v1492
        %s1495 = scalar_lea.vmem [#allocation9], 80
        %1496 = vst.msk [vmem:[%s1495] sm:$0xff] %vm616, %v1493
        %1497 = vst.msk [vmem:[%s1495 + $0x8] sm:$0xff] %vm616, %v1494
        %s1498 = scalar_lea.vmem [#allocation7], 96
        %v1499 = vld [vmem:[%s1498] sm:$0xff]
        %v1500 = vld [vmem:[%s1498 + $0x8] sm:$0xff]
        %v1501 = vmul.f32 %v1499, %v1493
        %v1502 = vmul.f32 %v1500, %v1494
        %s1503 = scalar_lea.vmem [#allocation8], 96
        %v1504 = vld [vmem:[%s1503] sm:$0xff]
        %v1505 = vld [vmem:[%s1503 + $0x8] sm:$0xff]
        %v1506 = vadd.f32 %v1501, %v1504
        %v1507 = vadd.f32 %v1502, %v1505
        %s1508 = scalar_lea.vmem [#allocation9], 96
        %1509 = vst.msk [vmem:[%s1508] sm:$0xff] %vm616, %v1506
        %1510 = vst.msk [vmem:[%s1508 + $0x8] sm:$0xff] %vm616, %v1507
        %s1511 = scalar_lea.vmem [#allocation7], 112
        %v1512 = vld [vmem:[%s1511] sm:$0xff]
        %v1513 = vld [vmem:[%s1511 + $0x8] sm:$0xff]
        %v1514 = vmul.f32 %v1512, %v1506
        %v1515 = vmul.f32 %v1513, %v1507
        %s1516 = scalar_lea.vmem [#allocation8], 112
        %v1517 = vld [vmem:[%s1516] sm:$0xff]
        %v1518 = vld [vmem:[%s1516 + $0x8] sm:$0xff]
        %v1519 = vadd.f32 %v1514, %v1517
        %v1520 = vadd.f32 %v1515, %v1518
        %s1521 = scalar_lea.vmem [#allocation9], 112
        %1522 = vst.msk [vmem:[%s1521] sm:$0xff] %vm616, %v1519
        %1523 = vst.msk [vmem:[%s1521 + $0x8] sm:$0xff] %vm616, %v1520
        %v1524 = vlaneseq
        %v1525 = vshrl.u32 %v1524, 7
        %v1526 = vsub.s32 0, %v1525
        %v1527 = vrot.slane %v1058, %v1526
        %1529 = vbcast.lane.b32.xlu0 %v1527, 256
        %v1530 = vpop.permute.xlu0 %1529
        %s1532 = sor.u32 256, 8
        %1533 = vbcast.lane.b32.xlu0 %v1527, %s1532
        %v1534 = vpop.permute.xlu0 %1533
        %v1535 = vlaneseq
        %v1536 = vshrl.u32 %v1535, 7
        %v1537 = vsub.s32 1, %v1536
        %v1538 = vrot.slane %v1058, %v1537
        %1540 = vbcast.lane.b32.xlu0 %v1538, 256
        %v1541 = vpop.permute.xlu0 %1540
        %s1543 = sor.u32 256, 8
        %1544 = vbcast.lane.b32.xlu0 %v1538, %s1543
        %v1545 = vpop.permute.xlu0 %1544
        %v1546 = vlaneseq
        %v1547 = vshrl.u32 %v1546, 7
        %v1548 = vsub.s32 2, %v1547
        %v1549 = vrot.slane %v1058, %v1548
        %1551 = vbcast.lane.b32.xlu0 %v1549, 256
        %v1552 = vpop.permute.xlu0 %1551
        %s1554 = sor.u32 256, 8
        %1555 = vbcast.lane.b32.xlu0 %v1549, %s1554
        %v1556 = vpop.permute.xlu0 %1555
        %v1557 = vlaneseq
        %v1558 = vshrl.u32 %v1557, 7
        %v1559 = vsub.s32 3, %v1558
        %v1560 = vrot.slane %v1058, %v1559
        %1562 = vbcast.lane.b32.xlu0 %v1560, 256
        %v1563 = vpop.permute.xlu0 %1562
        %s1565 = sor.u32 256, 8
        %1566 = vbcast.lane.b32.xlu0 %v1560, %s1565
        %v1567 = vpop.permute.xlu0 %1566
        %v1568 = vlaneseq
        %v1569 = vshrl.u32 %v1568, 7
        %v1570 = vsub.s32 4, %v1569
        %v1571 = vrot.slane %v1058, %v1570
        %1573 = vbcast.lane.b32.xlu0 %v1571, 256
        %v1574 = vpop.permute.xlu0 %1573
        %s1576 = sor.u32 256, 8
        %1577 = vbcast.lane.b32.xlu0 %v1571, %s1576
        %v1578 = vpop.permute.xlu0 %1577
        %v1579 = vlaneseq
        %v1580 = vshrl.u32 %v1579, 7
        %v1581 = vsub.s32 5, %v1580
        %v1582 = vrot.slane %v1058, %v1581
        %1584 = vbcast.lane.b32.xlu0 %v1582, 256
        %v1585 = vpop.permute.xlu0 %1584
        %s1587 = sor.u32 256, 8
        %1588 = vbcast.lane.b32.xlu0 %v1582, %s1587
        %v1589 = vpop.permute.xlu0 %1588
        %v1590 = vlaneseq
        %v1591 = vshrl.u32 %v1590, 7
        %v1592 = vsub.s32 6, %v1591
        %v1593 = vrot.slane %v1058, %v1592
        %1595 = vbcast.lane.b32.xlu0 %v1593, 256
        %v1596 = vpop.permute.xlu0 %1595
        %s1598 = sor.u32 256, 8
        %1599 = vbcast.lane.b32.xlu0 %v1593, %s1598
        %v1600 = vpop.permute.xlu0 %1599
        %v1601 = vlaneseq
        %v1602 = vshrl.u32 %v1601, 7
        %v1603 = vsub.s32 7, %v1602
        %v1604 = vrot.slane %v1058, %v1603
        %1606 = vbcast.lane.b32.xlu0 %v1604, 256
        %v1607 = vpop.permute.xlu0 %1606
        %s1609 = sor.u32 256, 8
        %1610 = vbcast.lane.b32.xlu0 %v1604, %s1609
        %v1611 = vpop.permute.xlu0 %1610
        %v1612 = vld [vmem:[#allocation9] sm:$0xff]
        %v1613 = vld [vmem:[#allocation9 + $0x8] sm:$0xff]
        %v1614 = vld [vmem:[#allocation9 + $0x10] sm:$0xff]
        %v1615 = vld [vmem:[#allocation9 + $0x18] sm:$0xff]
        %v1616 = vld [vmem:[#allocation9 + $0x20] sm:$0xff]
        %v1617 = vld [vmem:[#allocation9 + $0x28] sm:$0xff]
        %v1618 = vld [vmem:[#allocation9 + $0x30] sm:$0xff]
        %v1619 = vld [vmem:[#allocation9 + $0x38] sm:$0xff]
        %v1620 = vld [vmem:[#allocation9 + $0x40] sm:$0xff]
        %v1621 = vld [vmem:[#allocation9 + $0x48] sm:$0xff]
        %v1622 = vld [vmem:[#allocation9 + $0x50] sm:$0xff]
        %v1623 = vld [vmem:[#allocation9 + $0x58] sm:$0xff]
        %v1624 = vld [vmem:[#allocation9 + $0x60] sm:$0xff]
        %v1625 = vld [vmem:[#allocation9 + $0x68] sm:$0xff]
        %v1626 = vld [vmem:[#allocation9 + $0x70] sm:$0xff]
        %v1627 = vld [vmem:[#allocation9 + $0x78] sm:$0xff]
        %v1628 = vmul.f32 %v1530, %v1612
        %v1629 = vmul.f32 %v1534, %v1613
        %v1630 = vmul.f32 %v1541, %v1614
        %v1631 = vmul.f32 %v1545, %v1615
        %v1632 = vmul.f32 %v1552, %v1616
        %v1633 = vmul.f32 %v1556, %v1617
        %v1634 = vmul.f32 %v1563, %v1618
        %v1635 = vmul.f32 %v1567, %v1619
        %v1636 = vmul.f32 %v1574, %v1620
        %v1637 = vmul.f32 %v1578, %v1621
        %v1638 = vmul.f32 %v1585, %v1622
        %v1639 = vmul.f32 %v1589, %v1623
        %v1640 = vmul.f32 %v1596, %v1624
        %v1641 = vmul.f32 %v1600, %v1625
        %v1642 = vmul.f32 %v1607, %v1626
        %v1643 = vmul.f32 %v1611, %v1627
        %v1644 = vsel %vm616, %v1628, 0.0
        %v1645 = vsel %vm616, %v1629, 0.0
        %v1646 = vadd.f32 %v1644, %v1645
        %v1647 = vrot.slane %v1646, 4
        %v1648 = vadd.f32 %v1646, %v1647
        %v1649 = vrot.slane %v1648, 2
        %v1650 = vadd.f32 %v1648, %v1649
        %v1651 = vrot.slane %v1650, 1
        %v1652 = vadd.f32 %v1650, %v1651
        %v1653 = vsel %vm616, %v1630, 0.0
        %v1654 = vsel %vm616, %v1631, 0.0
        %v1655 = vadd.f32 %v1653, %v1654
        %v1656 = vrot.slane %v1655, 4
        %v1657 = vadd.f32 %v1655, %v1656
        %v1658 = vrot.slane %v1657, 2
        %v1659 = vadd.f32 %v1657, %v1658
        %v1660 = vrot.slane %v1659, 1
        %v1661 = vadd.f32 %v1659, %v1660
        %v1662 = vsel %vm616, %v1632, 0.0
        %v1663 = vsel %vm616, %v1633, 0.0
        %v1664 = vadd.f32 %v1662, %v1663
        %v1665 = vrot.slane %v1664, 4
        %v1666 = vadd.f32 %v1664, %v1665
        %v1667 = vrot.slane %v1666, 2
        %v1668 = vadd.f32 %v1666, %v1667
        %v1669 = vrot.slane %v1668, 1
        %v1670 = vadd.f32 %v1668, %v1669
        %v1671 = vsel %vm616, %v1634, 0.0
        %v1672 = vsel %vm616, %v1635, 0.0
        %v1673 = vadd.f32 %v1671, %v1672
        %v1674 = vrot.slane %v1673, 4
        %v1675 = vadd.f32 %v1673, %v1674
        %v1676 = vrot.slane %v1675, 2
        %v1677 = vadd.f32 %v1675, %v1676
        %v1678 = vrot.slane %v1677, 1
        %v1679 = vadd.f32 %v1677, %v1678
        %v1680 = vsel %vm616, %v1636, 0.0
        %v1681 = vsel %vm616, %v1637, 0.0
        %v1682 = vadd.f32 %v1680, %v1681
        %v1683 = vrot.slane %v1682, 4
        %v1684 = vadd.f32 %v1682, %v1683
        %v1685 = vrot.slane %v1684, 2
        %v1686 = vadd.f32 %v1684, %v1685
        %v1687 = vrot.slane %v1686, 1
        %v1688 = vadd.f32 %v1686, %v1687
        %v1689 = vsel %vm616, %v1638, 0.0
        %v1690 = vsel %vm616, %v1639, 0.0
        %v1691 = vadd.f32 %v1689, %v1690
        %v1692 = vrot.slane %v1691, 4
        %v1693 = vadd.f32 %v1691, %v1692
        %v1694 = vrot.slane %v1693, 2
        %v1695 = vadd.f32 %v1693, %v1694
        %v1696 = vrot.slane %v1695, 1
        %v1697 = vadd.f32 %v1695, %v1696
        %v1698 = vsel %vm616, %v1640, 0.0
        %v1699 = vsel %vm616, %v1641, 0.0
        %v1700 = vadd.f32 %v1698, %v1699
        %v1701 = vrot.slane %v1700, 4
        %v1702 = vadd.f32 %v1700, %v1701
        %v1703 = vrot.slane %v1702, 2
        %v1704 = vadd.f32 %v1702, %v1703
        %v1705 = vrot.slane %v1704, 1
        %v1706 = vadd.f32 %v1704, %v1705
        %v1707 = vsel %vm616, %v1642, 0.0
        %v1708 = vsel %vm616, %v1643, 0.0
        %v1709 = vadd.f32 %v1707, %v1708
        %v1710 = vrot.slane %v1709, 4
        %v1711 = vadd.f32 %v1709, %v1710
        %v1712 = vrot.slane %v1711, 2
        %v1713 = vadd.f32 %v1711, %v1712
        %v1714 = vrot.slane %v1713, 1
        %v1715 = vadd.f32 %v1713, %v1714
        %vm1724 = vcmask 1041409
        %v1725 = vsel %vm1724, %v1661, %v1652
        %vm1726 = vcmask 1042434
        %v1727 = vsel %vm1726, %v1670, %v1725
        %vm1728 = vcmask 1043459
        %v1729 = vsel %vm1728, %v1679, %v1727
        %vm1730 = vcmask 1044484
        %v1731 = vsel %vm1730, %v1688, %v1729
        %vm1732 = vcmask 1045509
        %v1733 = vsel %vm1732, %v1697, %v1731
        %vm1734 = vcmask 1046534
        %v1735 = vsel %vm1734, %v1706, %v1733
        %vm1736 = vcmask 1047559
        %v1737 = vsel %vm1736, %v1715, %v1735
        %1739 = vst.msk [vmem:[#allocation6] sm:$0xff] %vm616, %v1737
        %v1740 = vld [vmem:[#allocation6] sm:$0xff]
        %v1741 = vld [vmem:[%s11] sm:$0x1]
        %v1743 = vlaneseq
        %v1744 = vshrl.u32 %v1743, 7
        %v1745 = vsub.s32 0, %v1744
        %v1746 = vrot.slane %v1741, %v1745
        %v1748 = vmul.f32 %v1746, %v761
        %v1749 = vadd.f32 %v1740, %v1748
        %v1750 = vpack.c.bf16 %v1749, %v1749
        %v1751 = vld [vmem:[#allocation24] sm:$0xf]
        %v1752 = vld [vmem:[#allocation24 + $0x4] sm:$0xf]
        %v1753 = vld [vmem:[#allocation24 + $0x8] sm:$0xf]
        %v1754 = vld [vmem:[#allocation24 + $0xc] sm:$0xf]
        %v1755 = vpack.c.bf16 %v802, %v802
        %v1756 = vld [vmem:[%s13] sm:$0xf]
        %v1757 = vld [vmem:[%s13 + $0x4] sm:$0xf]
        %v1758 = vld [vmem:[%s13 + $0x8] sm:$0xf]
        %v1759 = vld [vmem:[%s13 + $0xc] sm:$0xf]
        %v1764 = vunpack.c.l.b16 %v1756
        %v1765 = vunpack.c.l.b16 %v1757
        %v1766 = vunpack.c.l.b16 %v1758
        %v1767 = vunpack.c.l.b16 %v1759
        %v1768 = vpack.c.b16 %v1765, %v1764
        %v1769 = vpack.c.b16 %v1767, %v1766
        %v1773 = vsel %vm616, %v1755, 0
        %1775 = vmatprep.subr.bf16.mxu0 0
        %1776 = vmatpush1.bf16.msra.mxu0 0
        %1777 = vmatprep.subr.bf16.mxu0 0
        %1778 = vmatpush1.bf16.msra.mxu0 0
        %1779 = vmatprep.subr.bf16.mxu0 0
        %1780 = vmatpush1.bf16.msra.mxu0 0
        %1781 = vmatprep.subr.bf16.mxu0 0
        %1782 = vmatpush1.bf16.msra.mxu0 0
        %1783 = vmatprep.subr.bf16.mxu0 0
        %1784 = vmatpush1.bf16.msra.mxu0 0
        %1785 = vmatprep.subr.bf16.mxu0 0
        %1786 = vmatpush1.bf16.msra.mxu0 0
        %1787 = vmatprep.subr.bf16.mxu0 0
        %1788 = vmatpush1.bf16.msra.mxu0 %v1769
        %1789 = vmatprep.subr.bf16.mxu0 0
        %1790 = vmatpush1.bf16.msra.mxu0 %v1768
        %1791 = vmatprep.subr.bf16.mxu0 0
        %1792 = vmatpush2.bf16.msra.mxu0 0
        %1793 = vmatprep.subr.bf16.mxu0 0
        %1794 = vmatpush2.bf16.msra.mxu0 0
        %1795 = vmatprep.subr.bf16.mxu0 0
        %1796 = vmatpush2.bf16.msra.mxu0 0
        %1797 = vmatprep.subr.bf16.mxu0 0
        %1798 = vmatpush2.bf16.msra.mxu0 0
        %1799 = vmatprep.subr.bf16.mxu0 0
        %1800 = vmatpush2.bf16.msra.mxu0 0
        %1801 = vmatprep.subr.bf16.mxu0 0
        %1802 = vmatpush2.bf16.msra.mxu0 0
        %1803 = vmatprep.subr.bf16.mxu0 0
        %1804 = vmatpush2.bf16.msra.mxu0 0
        %1805 = vmatprep.subr.bf16.mxu0 0
        %1806 = vmatpush2.bf16.msra.mxu0 0
        %1807 = vmatprep.mubr.bf16.mxu0 0
        %1808 = vmatmul.mubr.bf16.gmra.mxu0 %v1773
        %v1809 = vpop.f32.mrf.mxu0
        %v1810 = vadd.f32 0.0, %v1809
        %v1811 = vpop.f32.mrf.mxu0
        %v1812 = vpop.f32.mrf.mxu0
        %v1813 = vpop.f32.mrf.mxu0
        %1814 = vdwg.mxu0
        %v1819 = vunpack.c.l.b16 %v1751
        %v1820 = vunpack.c.l.b16 %v1752
        %v1821 = vunpack.c.l.b16 %v1753
        %v1822 = vunpack.c.l.b16 %v1754
        %v1823 = vpack.c.b16 %v1820, %v1819
        %v1824 = vpack.c.b16 %v1822, %v1821
        %v1828 = vsel %vm616, %v1750, 0
        %1830 = vmatprep.subr.bf16.mxu0 0
        %1831 = vmatpush1.bf16.msra.mxu0 0
        %1832 = vmatprep.subr.bf16.mxu0 0
        %1833 = vmatpush1.bf16.msra.mxu0 0
        %1834 = vmatprep.subr.bf16.mxu0 0
        %1835 = vmatpush1.bf16.msra.mxu0 0
        %1836 = vmatprep.subr.bf16.mxu0 0
        %1837 = vmatpush1.bf16.msra.mxu0 0
        %1838 = vmatprep.subr.bf16.mxu0 0
        %1839 = vmatpush1.bf16.msra.mxu0 0
        %1840 = vmatprep.subr.bf16.mxu0 0
        %1841 = vmatpush1.bf16.msra.mxu0 0
        %1842 = vmatprep.subr.bf16.mxu0 0
        %1843 = vmatpush1.bf16.msra.mxu0 %v1824
        %1844 = vmatprep.subr.bf16.mxu0 0
        %1845 = vmatpush1.bf16.msra.mxu0 %v1823
        %1846 = vmatprep.subr.bf16.mxu0 0
        %1847 = vmatpush2.bf16.msra.mxu0 0
        %1848 = vmatprep.subr.bf16.mxu0 0
        %1849 = vmatpush2.bf16.msra.mxu0 0
        %1850 = vmatprep.subr.bf16.mxu0 0
        %1851 = vmatpush2.bf16.msra.mxu0 0
        %1852 = vmatprep.subr.bf16.mxu0 0
        %1853 = vmatpush2.bf16.msra.mxu0 0
        %1854 = vmatprep.subr.bf16.mxu0 0
        %1855 = vmatpush2.bf16.msra.mxu0 0
        %1856 = vmatprep.subr.bf16.mxu0 0
        %1857 = vmatpush2.bf16.msra.mxu0 0
        %1858 = vmatprep.subr.bf16.mxu0 0
        %1859 = vmatpush2.bf16.msra.mxu0 0
        %1860 = vmatprep.subr.bf16.mxu0 0
        %1861 = vmatpush2.bf16.msra.mxu0 0
        %1862 = vmatprep.mubr.bf16.mxu0 0
        %1863 = vmatmul.mubr.bf16.gmra.mxu0 %v1828
        %v1864 = vpop.f32.mrf.mxu0
        %v1865 = vadd.f32 %v1810, %v1864
        %v1866 = vpop.f32.mrf.mxu0
        %v1867 = vpop.f32.mrf.mxu0
        %v1868 = vpop.f32.mrf.mxu0
        %1869 = vdwg.mxu0
        %1870 = vst.msk [vmem:[%s596] sm:$0xff] %vm616, %v1865
        %s1871 = sand.u32 %s342, 1
        %s1872 = scalar_lea.sflag [#allocation12], %s1871
        %s1873 = sand.u32 %s342, 1
        %s1874 = smul.addr %s1873, 8
        %s1875 = scalar_lea.vmem [#allocation25], %s1874
        // Predicated region
        $region113: #{_lambda_.1} parent=75 // pred_check
          %p1876 = pneg %p352
        $region114: #{_lambda_.1} parent=75 // pred_check_branch
          %1878 = sbr.rel (%p1876) target = $region116
        $region115: #{_lambda_.1} parent=75 // pred_region
          %s1880 = ssub.s32 128, 128
          %1881 = vsyncadd %s1872, %s1880
          %s1882 = smul.addr %s35, 128
          %s1883 = scalar_lea.hbm %s14, %s1882
          %s1885 = sshll.u32 %s1875, 4
          %s1886 = int_to_ptr.vmem [resolvable:$true] %s1885
          %1888 = dma.vmem_to_hbm [thread:$0]  %s1886, 128, %s1883, %s1872
        $region116: #{_lambda_.1} parent=75 // pred_fallthru
          _
      $region76: #{_lambda_.1} parent=5 // pred_fallthru
        _
      %p1889 = scmp.le.s32.totalorder 2, %s30
      // Predicated region
      $region117: #{_lambda_.1} parent=5 // pred_check
        %p1890 = pneg %p1889
      $region118: #{_lambda_.1} parent=5 // pred_check_branch
        %1892 = sbr.rel (%p1890) target = $region120
      $region119: #{_lambda_.1} parent=5 // pred_region
        %s1893 = ssub.s32 %s30, 2
        // Predicated region
        $region121: #{_lambda_.1} parent=119 // pred_check
          %p1894 = pneg %p358
        $region122: #{_lambda_.1} parent=119 // pred_check_branch
          %1896 = sbr.rel (%p1894) target = $region124
        $region123: #{_lambda_.1} parent=119 // pred_region
          %s1897 = sand.u32 %s343, 1
          %s1898 = scalar_lea.sflag [#allocation12], %s1897
          %s1899 = sand.u32 %s343, 1
          %s1900 = smul.addr %s1899, 8
          %s1901 = scalar_lea.vmem [#allocation25], %s1900
          %1902 = dma.done %s1898, 128
        $region124: #{_lambda_.1} parent=119 // pred_fallthru
          _
      $region120: #{_lambda_.1} parent=5 // pred_fallthru
        _
    $region6: #{_lambda_.1} parent=1 // loop_footer
      %s34 = sadd.s32 1, %s30
    $region7: #{_lambda_.1} parent=1 // loop_footer_branch
      %29 = sbr.rel target = $region3
    $region8: #{_lambda_.1} parent=1 // loop_exit
      _
    %1903 = vsyncpa [#allocation11], 1
    %s1904 = scalar_lea.sflag [#allocation11], 1
    %1905 = vsyncpa %s1904, 1
    %1906 = vsyncpa [#allocation14], 1
    %1907 = vsyncpa [#allocation17], 1
    %1908 = vsyncpa [#allocation20], 1
    %1909 = vsyncpa [#allocation23], 1
    %1910 = vsyncpa [#allocation12], 1
    %s1911 = scalar_lea.sflag [#allocation12], 1
    %1912 = vsyncpa %s1911, 1

</llo_original>
